<compile_context>
chip_gen: v5e
topology: v5e:2x2
jax: 0.10.0
libtpu: 0.0.40
codegen_flags: <defaults>
</compile_context>

<pallas_src>
import functools

import jax
import jax.numpy as jnp
from jax.experimental import pallas as pl
from jax.experimental.pallas import tpu as pltpu

D_IN = 128
D_OUT = 20
D_PAD = 128          # lane-dense classifier output width (sliced to 20 outside)
NEG_SLOPE = 0.01     # nn.LeakyReLU default


def _leaky_relu(v):
    return jnp.where(v > 0, v, NEG_SLOPE * v)


def fc_t_kernel(x_ref, w1_ref, b1_ref, w2_ref, b2_ref, w3_ref, b3_ref,
                wc_ref, bc_ref, out_ref, *, t_steps):
    tb = x_ref.shape[0]

    # Embed weights resident in bf16 (MXU operands); biases in f32.
    w1 = w1_ref[...]
    w2 = w2_ref[...]
    w3 = w3_ref[...]
    b1 = b1_ref[...]
    b2 = b2_ref[...]
    b3 = b3_ref[...]

    # Time loop: per step, three 128x128 bf16 matmuls (f32 accumulation on the
    # MXU) and the residual + mean-pool accumulation fused in f32.  All big
    # temps are (tb, 128) -- never (tb*T, 128).  T is small for this model
    # (openmic uses T=10), so a static unroll is fine.
    # TODO(synk): for very long T switch to lax.fori_loop to bound code size.
    acc = jnp.zeros((tb, D_IN), dtype=jnp.float32)
    for t in range(t_steps):
        xt = x_ref[:, t, :]                                 # (tb, 128) f32
        xb = xt.astype(jnp.bfloat16)
        h = _leaky_relu(
            jnp.dot(xb, w1, preferred_element_type=jnp.float32) + b1)
        h = _leaky_relu(
            jnp.dot(h.astype(jnp.bfloat16), w2,
                    preferred_element_type=jnp.float32) + b2)
        h = _leaky_relu(
            jnp.dot(h.astype(jnp.bfloat16), w3,
                    preferred_element_type=jnp.float32) + b3)
        # Dropout(0.5) layers are identities in eval mode.
        acc = acc + h + xt                                  # residual, f32

    pooled = acc * (1.0 / t_steps)                          # mean over time

    # Classifier: bf16 operands, f32 accumulation, 128-lane padded output so
    # the store is lane-dense (unmasked vst).
    logits = jnp.dot(pooled.astype(jnp.bfloat16), wc_ref[...],
                     preferred_element_type=jnp.float32) + bc_ref[...]
    out_ref[...] = 1.0 / (1.0 + jnp.exp(-logits))           # sigmoid, (tb, 128)


def _choose_tb(B, T, rows_per_block):
    """Pick the batch tile. Either tb == B (tiny batch) or tb % 8 == 0, so the
    (tb, 128) output block is always sublane-aligned for any T."""
    if B <= 8:
        return B                       # whole batch in one block (full dims)
    tb = max(1, rows_per_block // max(T, 1))
    if tb >= B:
        tb = -(-B // 2)                # >= 2 grid steps -> both v7x TCs busy
    return max(8, (tb // 8) * 8)


def _vmem_limit_bytes(tb, t):
    x_blk = tb * t * D_IN * 4                                 # f32 input block
    out_blk = tb * D_PAD * 4
    weights = 2 * (3 * D_IN * D_IN * 2 + D_IN * D_PAD * 2 + 4 * D_PAD * 4)
    temps = 8 * tb * D_IN * 4               # (tb,128) f32 live values / spill
    est = 2 * x_blk + 2 * out_blk + weights + temps + (4 << 20)
    cap = 48 << 20                          # safe on v7x's 64 MiB physical VMEM
    try:
        cap = min(cap,
                  int(pltpu.get_tpu_info().vmem_capacity_bytes) - (8 << 20))
    except Exception:
        pass
    return int(min(max(est, 8 << 20), max(cap, 16 << 20)))


def fc_t_forward(x, params, *, rows_per_block=16384):
    """x: (B, T, 128) float32 (passed to the kernel unmodified).
    params: f32 weights in (in, out) layout."""
    B, T, D = x.shape
    assert D == D_IN

    tb = _choose_tb(B, T, rows_per_block)
    grid = (pl.cdiv(B, tb),)

    # bf16 embed + classifier weights (MXU operands); f32 biases; classifier
    # zero-padded 20 -> 128 output columns for a lane-dense store.
    w1 = params["w1"].astype(jnp.bfloat16)
    w2 = params["w2"].astype(jnp.bfloat16)
    w3 = params["w3"].astype(jnp.bfloat16)
    b1, b2, b3 = params["b1"], params["b2"], params["b3"]
    wc_p = jnp.pad(params["wc"],
                   ((0, 0), (0, D_PAD - D_OUT))).astype(jnp.bfloat16)
    bc_p = jnp.pad(params["bc"], ((0, 0), (0, D_PAD - D_OUT)))

    kernel = functools.partial(fc_t_kernel, t_steps=T)

    flops = 2 * B * T * D_IN * D_IN * 3 + 2 * B * D_IN * D_PAD
    bytes_acc = (x.size * 4 + 3 * D_IN * D_IN * 2 + D_IN * D_PAD * 2
                 + 4 * D_PAD * 4 + B * D_PAD * 4)

    const_w = pl.BlockSpec((D_IN, D_IN), lambda i: (0, 0))
    const_b = pl.BlockSpec((1, D_IN), lambda i: (0, 0))

    # NOTE: when B % tb != 0 the last grid step reads past the end of x along
    # the batch axis; the garbage only lands in pooled rows >= B, whose output
    # rows are outside the (B, D_PAD) array and never written back.  This is
    # safe only because each output row depends solely on its own batch
    # entry's time rows -- keep it that way.
    out = pl.pallas_call(
        kernel,
        out_shape=jax.ShapeDtypeStruct((B, D_PAD), jnp.float32),
        grid=grid,
        in_specs=[
            # x streamed straight from HBM in f32; (T, 128) == full array dims
            # so any T is a legal block shape (no padding needed).
            pl.BlockSpec((tb, T, D_IN), lambda i: (i, 0, 0)),
            const_w, const_b,                                 # w1, b1
            const_w, const_b,                                 # w2, b2
            const_w, const_b,                                 # w3, b3
            pl.BlockSpec((D_IN, D_PAD), lambda i: (0, 0)),    # wc (padded)
            pl.BlockSpec((1, D_PAD), lambda i: (0, 0)),       # bc (padded)
        ],
        out_specs=pl.BlockSpec((tb, D_PAD), lambda i: (i, 0)),
        compiler_params=pltpu.CompilerParams(
            dimension_semantics=("parallel",),
            vmem_limit_bytes=_vmem_limit_bytes(tb, T)),
        cost_estimate=pl.CostEstimate(
            flops=int(flops), transcendentals=int(B * D_PAD),
            bytes_accessed=int(bytes_acc)),
    )(x, w1, b1, w2, b2, w3, b3, wc_p, bc_p)

    return out[:, :D_OUT]


def init_params(key):
    """Deterministic xavier_normal_ weights, zero biases (as in FC_T.__init__).
    PyTorch Linear weights are (out, in); we store the transpose (in, out)."""
    def xavier(key, fan_in, fan_out):
        std = (2.0 / (fan_in + fan_out)) ** 0.5
        w = std * jax.random.normal(key, (fan_out, fan_in), dtype=jnp.float32)
        return w.T

    k1, k2, k3, k4 = jax.random.split(key, 4)
    return {
        "w1": xavier(k1, D_IN, D_IN), "b1": jnp.zeros((1, D_IN), jnp.float32),
        "w2": xavier(k2, D_IN, D_IN), "b2": jnp.zeros((1, D_IN), jnp.float32),
        "w3": xavier(k3, D_IN, D_IN), "b3": jnp.zeros((1, D_IN), jnp.float32),
        "wc": xavier(k4, D_IN, D_OUT), "bc": jnp.zeros((1, D_OUT), jnp.float32),
    }


def reference_forward(x, params):
    """Pure-JAX f32 reference of FC_T.forward (eval mode)."""
    def leaky(v):
        return jnp.where(v > 0, v, NEG_SLOPE * v)
    h = leaky(x @ params["w1"] + params["b1"])
    h = leaky(h @ params["w2"] + params["b2"])
    h = leaky(h @ params["w3"] + params["b3"])
    pooled = (h + x).mean(axis=1)
    return jax.nn.sigmoid(pooled @ params["wc"] + params["bc"])


if __name__ == "__main__":
    key = jax.random.PRNGKey(0)
    kx, kp = jax.random.split(key)

    # T=10 matches openmic and exercises the no-padding (T % 8 != 0) path;
    # B=16 gives a 2-step grid (tb=8) so both TensorCores are exercised.
    B, T = 16, 10
    x = jax.random.normal(kx, (B, T, D_IN), dtype=jnp.float32)
    params = init_params(kp)

    out = jax.block_until_ready(fc_t_forward(x, params))
    ref = reference_forward(x, params)

    assert out.shape == (B, D_OUT)
    # bf16 MXU operands (f32 accumulation) vs the pure-f32 reference.
    assert jnp.allclose(out, ref, atol=2e-2, rtol=0.0), float(
        jnp.max(jnp.abs(out - ref)))

    print("KERNEL_OK")
</pallas_src>

<mosaic_0001>
module attributes {stable_mosaic.version = 11 : i64} {
  func.func @fc_t_kernel(%arg0: i32, %arg1: memref<8x10x128xf32, #tpu.memory_space<vmem>>, %arg2: memref<128x128xbf16, #tpu.memory_space<vmem>>, %arg3: memref<1x128xf32, #tpu.memory_space<vmem>>, %arg4: memref<128x128xbf16, #tpu.memory_space<vmem>>, %arg5: memref<1x128xf32, #tpu.memory_space<vmem>>, %arg6: memref<128x128xbf16, #tpu.memory_space<vmem>>, %arg7: memref<1x128xf32, #tpu.memory_space<vmem>>, %arg8: memref<128x128xbf16, #tpu.memory_space<vmem>>, %arg9: memref<1x128xf32, #tpu.memory_space<vmem>>, %arg10: memref<8x128xf32, #tpu.memory_space<vmem>>) attributes {dimension_semantics = [#tpu.dimension_semantics<parallel>], iteration_bounds = array<i64: 2>, scalar_prefetch = 0 : i64, scratch_operands = 0 : i64, tpu.core_type = #tpu.core_type<tc>, window_params = [{transform_indices = @transform_0, window_bounds = array<i64: 8, 10, 128>}, {pipeline_mode = #tpu.pipeline_mode<synchronous>, transform_indices = @transform_1, window_bounds = array<i64: 128, 128>}, {pipeline_mode = #tpu.pipeline_mode<synchronous>, transform_indices = @transform_2, window_bounds = array<i64: 1, 128>}, {pipeline_mode = #tpu.pipeline_mode<synchronous>, transform_indices = @transform_3, window_bounds = array<i64: 128, 128>}, {pipeline_mode = #tpu.pipeline_mode<synchronous>, transform_indices = @transform_4, window_bounds = array<i64: 1, 128>}, {pipeline_mode = #tpu.pipeline_mode<synchronous>, transform_indices = @transform_5, window_bounds = array<i64: 128, 128>}, {pipeline_mode = #tpu.pipeline_mode<synchronous>, transform_indices = @transform_6, window_bounds = array<i64: 1, 128>}, {pipeline_mode = #tpu.pipeline_mode<synchronous>, transform_indices = @transform_7, window_bounds = array<i64: 128, 128>}, {pipeline_mode = #tpu.pipeline_mode<synchronous>, transform_indices = @transform_8, window_bounds = array<i64: 1, 128>}, {transform_indices = @transform_9, window_bounds = array<i64: 8, 128>}]} {
    %c0 = arith.constant 0 : index
    %c0_0 = arith.constant 0 : index
    %0 = vector.load %arg2[%c0, %c0_0] : memref<128x128xbf16, #tpu.memory_space<vmem>>, vector<128x128xbf16>
    %c0_1 = arith.constant 0 : index
    %c0_2 = arith.constant 0 : index
    %1 = vector.load %arg4[%c0_1, %c0_2] : memref<128x128xbf16, #tpu.memory_space<vmem>>, vector<128x128xbf16>
    %c0_3 = arith.constant 0 : index
    %c0_4 = arith.constant 0 : index
    %2 = vector.load %arg6[%c0_3, %c0_4] : memref<128x128xbf16, #tpu.memory_space<vmem>>, vector<128x128xbf16>
    %c0_5 = arith.constant 0 : index
    %c0_6 = arith.constant 0 : index
    %3 = vector.load %arg3[%c0_5, %c0_6] : memref<1x128xf32, #tpu.memory_space<vmem>>, vector<1x128xf32>
    %c0_7 = arith.constant 0 : index
    %c0_8 = arith.constant 0 : index
    %4 = vector.load %arg5[%c0_7, %c0_8] : memref<1x128xf32, #tpu.memory_space<vmem>>, vector<1x128xf32>
    %c0_9 = arith.constant 0 : index
    %c0_10 = arith.constant 0 : index
    %5 = vector.load %arg7[%c0_9, %c0_10] : memref<1x128xf32, #tpu.memory_space<vmem>>, vector<1x128xf32>
    %cst = arith.constant 0.000000e+00 : f32
    %6 = vector.broadcast %cst : f32 to vector<8x128xf32>
    %c0_11 = arith.constant 0 : index
    %c0_12 = arith.constant 0 : index
    %c0_13 = arith.constant 0 : index
    %7 = vector.load %arg1[%c0_11, %c0_12, %c0_13] : memref<8x10x128xf32, #tpu.memory_space<vmem>>, vector<8x1x128xf32>
    %8 = vector.shape_cast %7 : vector<8x1x128xf32> to vector<8x128xf32>
    %9 = arith.truncf %8 : vector<8x128xf32> to vector<8x128xbf16>
    %cst_14 = arith.constant dense<0.000000e+00> : vector<8x128xf32>
    %10 = tpu.matmul %9, %0, %cst_14 {dimension_numbers = #tpu.dot_dimension_numbers<[1], [0], [0], [1], [0, 0, 1, 1], [], []>} : vector<8x128xbf16>, vector<128x128xbf16>, vector<8x128xf32> -> vector<8x128xf32>
    %11 = vector.broadcast %3 : vector<1x128xf32> to vector<8x128xf32>
    %12 = arith.addf %10, %11 : vector<8x128xf32>
    %cst_15 = arith.constant 0.000000e+00 : f32
    %13 = vector.broadcast %cst_15 : f32 to vector<8x128xf32>
    %14 = arith.cmpf ogt, %12, %13 : vector<8x128xf32>
    %cst_16 = arith.constant 0.00999999977 : f32
    %15 = vector.broadcast %cst_16 : f32 to vector<8x128xf32>
    %16 = arith.mulf %15, %12 : vector<8x128xf32>
    %17 = arith.select %14, %12, %16 : vector<8x128xi1>, vector<8x128xf32>
    %18 = arith.truncf %17 : vector<8x128xf32> to vector<8x128xbf16>
    %cst_17 = arith.constant dense<0.000000e+00> : vector<8x128xf32>
    %19 = tpu.matmul %18, %1, %cst_17 {dimension_numbers = #tpu.dot_dimension_numbers<[1], [0], [0], [1], [0, 0, 1, 1], [], []>} : vector<8x128xbf16>, vector<128x128xbf16>, vector<8x128xf32> -> vector<8x128xf32>
    %20 = vector.broadcast %4 : vector<1x128xf32> to vector<8x128xf32>
    %21 = arith.addf %19, %20 : vector<8x128xf32>
    %cst_18 = arith.constant 0.000000e+00 : f32
    %22 = vector.broadcast %cst_18 : f32 to vector<8x128xf32>
    %23 = arith.cmpf ogt, %21, %22 : vector<8x128xf32>
    %cst_19 = arith.constant 0.00999999977 : f32
    %24 = vector.broadcast %cst_19 : f32 to vector<8x128xf32>
    %25 = arith.mulf %24, %21 : vector<8x128xf32>
    %26 = arith.select %23, %21, %25 : vector<8x128xi1>, vector<8x128xf32>
    %27 = arith.truncf %26 : vector<8x128xf32> to vector<8x128xbf16>
    %cst_20 = arith.constant dense<0.000000e+00> : vector<8x128xf32>
    %28 = tpu.matmul %27, %2, %cst_20 {dimension_numbers = #tpu.dot_dimension_numbers<[1], [0], [0], [1], [0, 0, 1, 1], [], []>} : vector<8x128xbf16>, vector<128x128xbf16>, vector<8x128xf32> -> vector<8x128xf32>
    %29 = vector.broadcast %5 : vector<1x128xf32> to vector<8x128xf32>
    %30 = arith.addf %28, %29 : vector<8x128xf32>
    %cst_21 = arith.constant 0.000000e+00 : f32
    %31 = vector.broadcast %cst_21 : f32 to vector<8x128xf32>
    %32 = arith.cmpf ogt, %30, %31 : vector<8x128xf32>
    %cst_22 = arith.constant 0.00999999977 : f32
    %33 = vector.broadcast %cst_22 : f32 to vector<8x128xf32>
    %34 = arith.mulf %33, %30 : vector<8x128xf32>
    %35 = arith.select %32, %30, %34 : vector<8x128xi1>, vector<8x128xf32>
    %36 = arith.addf %6, %35 : vector<8x128xf32>
    %37 = arith.addf %36, %8 : vector<8x128xf32>
    %c0_23 = arith.constant 0 : index
    %c1 = arith.constant 1 : index
    %c0_24 = arith.constant 0 : index
    %38 = vector.load %arg1[%c0_23, %c1, %c0_24] : memref<8x10x128xf32, #tpu.memory_space<vmem>>, vector<8x1x128xf32>
    %39 = vector.shape_cast %38 : vector<8x1x128xf32> to vector<8x128xf32>
    %40 = arith.truncf %39 : vector<8x128xf32> to vector<8x128xbf16>
    %cst_25 = arith.constant dense<0.000000e+00> : vector<8x128xf32>
    %41 = tpu.matmul %40, %0, %cst_25 {dimension_numbers = #tpu.dot_dimension_numbers<[1], [0], [0], [1], [0, 0, 1, 1], [], []>} : vector<8x128xbf16>, vector<128x128xbf16>, vector<8x128xf32> -> vector<8x128xf32>
    %42 = vector.broadcast %3 : vector<1x128xf32> to vector<8x128xf32>
    %43 = arith.addf %41, %42 : vector<8x128xf32>
    %cst_26 = arith.constant 0.000000e+00 : f32
    %44 = vector.broadcast %cst_26 : f32 to vector<8x128xf32>
    %45 = arith.cmpf ogt, %43, %44 : vector<8x128xf32>
    %cst_27 = arith.constant 0.00999999977 : f32
    %46 = vector.broadcast %cst_27 : f32 to vector<8x128xf32>
    %47 = arith.mulf %46, %43 : vector<8x128xf32>
    %48 = arith.select %45, %43, %47 : vector<8x128xi1>, vector<8x128xf32>
    %49 = arith.truncf %48 : vector<8x128xf32> to vector<8x128xbf16>
    %cst_28 = arith.constant dense<0.000000e+00> : vector<8x128xf32>
    %50 = tpu.matmul %49, %1, %cst_28 {dimension_numbers = #tpu.dot_dimension_numbers<[1], [0], [0], [1], [0, 0, 1, 1], [], []>} : vector<8x128xbf16>, vector<128x128xbf16>, vector<8x128xf32> -> vector<8x128xf32>
    %51 = vector.broadcast %4 : vector<1x128xf32> to vector<8x128xf32>
    %52 = arith.addf %50, %51 : vector<8x128xf32>
    %cst_29 = arith.constant 0.000000e+00 : f32
    %53 = vector.broadcast %cst_29 : f32 to vector<8x128xf32>
    %54 = arith.cmpf ogt, %52, %53 : vector<8x128xf32>
    %cst_30 = arith.constant 0.00999999977 : f32
    %55 = vector.broadcast %cst_30 : f32 to vector<8x128xf32>
    %56 = arith.mulf %55, %52 : vector<8x128xf32>
    %57 = arith.select %54, %52, %56 : vector<8x128xi1>, vector<8x128xf32>
    %58 = arith.truncf %57 : vector<8x128xf32> to vector<8x128xbf16>
    %cst_31 = arith.constant dense<0.000000e+00> : vector<8x128xf32>
    %59 = tpu.matmul %58, %2, %cst_31 {dimension_numbers = #tpu.dot_dimension_numbers<[1], [0], [0], [1], [0, 0, 1, 1], [], []>} : vector<8x128xbf16>, vector<128x128xbf16>, vector<8x128xf32> -> vector<8x128xf32>
    %60 = vector.broadcast %5 : vector<1x128xf32> to vector<8x128xf32>
    %61 = arith.addf %59, %60 : vector<8x128xf32>
    %cst_32 = arith.constant 0.000000e+00 : f32
    %62 = vector.broadcast %cst_32 : f32 to vector<8x128xf32>
    %63 = arith.cmpf ogt, %61, %62 : vector<8x128xf32>
    %cst_33 = arith.constant 0.00999999977 : f32
    %64 = vector.broadcast %cst_33 : f32 to vector<8x128xf32>
    %65 = arith.mulf %64, %61 : vector<8x128xf32>
    %66 = arith.select %63, %61, %65 : vector<8x128xi1>, vector<8x128xf32>
    %67 = arith.addf %37, %66 : vector<8x128xf32>
    %68 = arith.addf %67, %39 : vector<8x128xf32>
    %c0_34 = arith.constant 0 : index
    %c2 = arith.constant 2 : index
    %c0_35 = arith.constant 0 : index
    %69 = vector.load %arg1[%c0_34, %c2, %c0_35] : memref<8x10x128xf32, #tpu.memory_space<vmem>>, vector<8x1x128xf32>
    %70 = vector.shape_cast %69 : vector<8x1x128xf32> to vector<8x128xf32>
    %71 = arith.truncf %70 : vector<8x128xf32> to vector<8x128xbf16>
    %cst_36 = arith.constant dense<0.000000e+00> : vector<8x128xf32>
    %72 = tpu.matmul %71, %0, %cst_36 {dimension_numbers = #tpu.dot_dimension_numbers<[1], [0], [0], [1], [0, 0, 1, 1], [], []>} : vector<8x128xbf16>, vector<128x128xbf16>, vector<8x128xf32> -> vector<8x128xf32>
    %73 = vector.broadcast %3 : vector<1x128xf32> to vector<8x128xf32>
    %74 = arith.addf %72, %73 : vector<8x128xf32>
    %cst_37 = arith.constant 0.000000e+00 : f32
    %75 = vector.broadcast %cst_37 : f32 to vector<8x128xf32>
    %76 = arith.cmpf ogt, %74, %75 : vector<8x128xf32>
    %cst_38 = arith.constant 0.00999999977 : f32
    %77 = vector.broadcast %cst_38 : f32 to vector<8x128xf32>
    %78 = arith.mulf %77, %74 : vector<8x128xf32>
    %79 = arith.select %76, %74, %78 : vector<8x128xi1>, vector<8x128xf32>
    %80 = arith.truncf %79 : vector<8x128xf32> to vector<8x128xbf16>
    %cst_39 = arith.constant dense<0.000000e+00> : vector<8x128xf32>
    %81 = tpu.matmul %80, %1, %cst_39 {dimension_numbers = #tpu.dot_dimension_numbers<[1], [0], [0], [1], [0, 0, 1, 1], [], []>} : vector<8x128xbf16>, vector<128x128xbf16>, vector<8x128xf32> -> vector<8x128xf32>
    %82 = vector.broadcast %4 : vector<1x128xf32> to vector<8x128xf32>
    %83 = arith.addf %81, %82 : vector<8x128xf32>
    %cst_40 = arith.constant 0.000000e+00 : f32
    %84 = vector.broadcast %cst_40 : f32 to vector<8x128xf32>
    %85 = arith.cmpf ogt, %83, %84 : vector<8x128xf32>
    %cst_41 = arith.constant 0.00999999977 : f32
    %86 = vector.broadcast %cst_41 : f32 to vector<8x128xf32>
    %87 = arith.mulf %86, %83 : vector<8x128xf32>
    %88 = arith.select %85, %83, %87 : vector<8x128xi1>, vector<8x128xf32>
    %89 = arith.truncf %88 : vector<8x128xf32> to vector<8x128xbf16>
    %cst_42 = arith.constant dense<0.000000e+00> : vector<8x128xf32>
    %90 = tpu.matmul %89, %2, %cst_42 {dimension_numbers = #tpu.dot_dimension_numbers<[1], [0], [0], [1], [0, 0, 1, 1], [], []>} : vector<8x128xbf16>, vector<128x128xbf16>, vector<8x128xf32> -> vector<8x128xf32>
    %91 = vector.broadcast %5 : vector<1x128xf32> to vector<8x128xf32>
    %92 = arith.addf %90, %91 : vector<8x128xf32>
    %cst_43 = arith.constant 0.000000e+00 : f32
    %93 = vector.broadcast %cst_43 : f32 to vector<8x128xf32>
    %94 = arith.cmpf ogt, %92, %93 : vector<8x128xf32>
    %cst_44 = arith.constant 0.00999999977 : f32
    %95 = vector.broadcast %cst_44 : f32 to vector<8x128xf32>
    %96 = arith.mulf %95, %92 : vector<8x128xf32>
    %97 = arith.select %94, %92, %96 : vector<8x128xi1>, vector<8x128xf32>
    %98 = arith.addf %68, %97 : vector<8x128xf32>
    %99 = arith.addf %98, %70 : vector<8x128xf32>
    %c0_45 = arith.constant 0 : index
    %c3 = arith.constant 3 : index
    %c0_46 = arith.constant 0 : index
    %100 = vector.load %arg1[%c0_45, %c3, %c0_46] : memref<8x10x128xf32, #tpu.memory_space<vmem>>, vector<8x1x128xf32>
    %101 = vector.shape_cast %100 : vector<8x1x128xf32> to vector<8x128xf32>
    %102 = arith.truncf %101 : vector<8x128xf32> to vector<8x128xbf16>
    %cst_47 = arith.constant dense<0.000000e+00> : vector<8x128xf32>
    %103 = tpu.matmul %102, %0, %cst_47 {dimension_numbers = #tpu.dot_dimension_numbers<[1], [0], [0], [1], [0, 0, 1, 1], [], []>} : vector<8x128xbf16>, vector<128x128xbf16>, vector<8x128xf32> -> vector<8x128xf32>
    %104 = vector.broadcast %3 : vector<1x128xf32> to vector<8x128xf32>
    %105 = arith.addf %103, %104 : vector<8x128xf32>
    %cst_48 = arith.constant 0.000000e+00 : f32
    %106 = vector.broadcast %cst_48 : f32 to vector<8x128xf32>
    %107 = arith.cmpf ogt, %105, %106 : vector<8x128xf32>
    %cst_49 = arith.constant 0.00999999977 : f32
    %108 = vector.broadcast %cst_49 : f32 to vector<8x128xf32>
    %109 = arith.mulf %108, %105 : vector<8x128xf32>
    %110 = arith.select %107, %105, %109 : vector<8x128xi1>, vector<8x128xf32>
    %111 = arith.truncf %110 : vector<8x128xf32> to vector<8x128xbf16>
    %cst_50 = arith.constant dense<0.000000e+00> : vector<8x128xf32>
    %112 = tpu.matmul %111, %1, %cst_50 {dimension_numbers = #tpu.dot_dimension_numbers<[1], [0], [0], [1], [0, 0, 1, 1], [], []>} : vector<8x128xbf16>, vector<128x128xbf16>, vector<8x128xf32> -> vector<8x128xf32>
    %113 = vector.broadcast %4 : vector<1x128xf32> to vector<8x128xf32>
    %114 = arith.addf %112, %113 : vector<8x128xf32>
    %cst_51 = arith.constant 0.000000e+00 : f32
    %115 = vector.broadcast %cst_51 : f32 to vector<8x128xf32>
    %116 = arith.cmpf ogt, %114, %115 : vector<8x128xf32>
    %cst_52 = arith.constant 0.00999999977 : f32
    %117 = vector.broadcast %cst_52 : f32 to vector<8x128xf32>
    %118 = arith.mulf %117, %114 : vector<8x128xf32>
    %119 = arith.select %116, %114, %118 : vector<8x128xi1>, vector<8x128xf32>
    %120 = arith.truncf %119 : vector<8x128xf32> to vector<8x128xbf16>
    %cst_53 = arith.constant dense<0.000000e+00> : vector<8x128xf32>
    %121 = tpu.matmul %120, %2, %cst_53 {dimension_numbers = #tpu.dot_dimension_numbers<[1], [0], [0], [1], [0, 0, 1, 1], [], []>} : vector<8x128xbf16>, vector<128x128xbf16>, vector<8x128xf32> -> vector<8x128xf32>
    %122 = vector.broadcast %5 : vector<1x128xf32> to vector<8x128xf32>
    %123 = arith.addf %121, %122 : vector<8x128xf32>
    %cst_54 = arith.constant 0.000000e+00 : f32
    %124 = vector.broadcast %cst_54 : f32 to vector<8x128xf32>
    %125 = arith.cmpf ogt, %123, %124 : vector<8x128xf32>
    %cst_55 = arith.constant 0.00999999977 : f32
    %126 = vector.broadcast %cst_55 : f32 to vector<8x128xf32>
    %127 = arith.mulf %126, %123 : vector<8x128xf32>
    %128 = arith.select %125, %123, %127 : vector<8x128xi1>, vector<8x128xf32>
    %129 = arith.addf %99, %128 : vector<8x128xf32>
    %130 = arith.addf %129, %101 : vector<8x128xf32>
    %c0_56 = arith.constant 0 : index
    %c4 = arith.constant 4 : index
    %c0_57 = arith.constant 0 : index
    %131 = vector.load %arg1[%c0_56, %c4, %c0_57] : memref<8x10x128xf32, #tpu.memory_space<vmem>>, vector<8x1x128xf32>
    %132 = vector.shape_cast %131 : vector<8x1x128xf32> to vector<8x128xf32>
    %133 = arith.truncf %132 : vector<8x128xf32> to vector<8x128xbf16>
    %cst_58 = arith.constant dense<0.000000e+00> : vector<8x128xf32>
    %134 = tpu.matmul %133, %0, %cst_58 {dimension_numbers = #tpu.dot_dimension_numbers<[1], [0], [0], [1], [0, 0, 1, 1], [], []>} : vector<8x128xbf16>, vector<128x128xbf16>, vector<8x128xf32> -> vector<8x128xf32>
    %135 = vector.broadcast %3 : vector<1x128xf32> to vector<8x128xf32>
    %136 = arith.addf %134, %135 : vector<8x128xf32>
    %cst_59 = arith.constant 0.000000e+00 : f32
    %137 = vector.broadcast %cst_59 : f32 to vector<8x128xf32>
    %138 = arith.cmpf ogt, %136, %137 : vector<8x128xf32>
    %cst_60 = arith.constant 0.00999999977 : f32
    %139 = vector.broadcast %cst_60 : f32 to vector<8x128xf32>
    %140 = arith.mulf %139, %136 : vector<8x128xf32>
    %141 = arith.select %138, %136, %140 : vector<8x128xi1>, vector<8x128xf32>
    %142 = arith.truncf %141 : vector<8x128xf32> to vector<8x128xbf16>
    %cst_61 = arith.constant dense<0.000000e+00> : vector<8x128xf32>
    %143 = tpu.matmul %142, %1, %cst_61 {dimension_numbers = #tpu.dot_dimension_numbers<[1], [0], [0], [1], [0, 0, 1, 1], [], []>} : vector<8x128xbf16>, vector<128x128xbf16>, vector<8x128xf32> -> vector<8x128xf32>
    %144 = vector.broadcast %4 : vector<1x128xf32> to vector<8x128xf32>
    %145 = arith.addf %143, %144 : vector<8x128xf32>
    %cst_62 = arith.constant 0.000000e+00 : f32
    %146 = vector.broadcast %cst_62 : f32 to vector<8x128xf32>
    %147 = arith.cmpf ogt, %145, %146 : vector<8x128xf32>
    %cst_63 = arith.constant 0.00999999977 : f32
    %148 = vector.broadcast %cst_63 : f32 to vector<8x128xf32>
    %149 = arith.mulf %148, %145 : vector<8x128xf32>
    %150 = arith.select %147, %145, %149 : vector<8x128xi1>, vector<8x128xf32>
    %151 = arith.truncf %150 : vector<8x128xf32> to vector<8x128xbf16>
    %cst_64 = arith.constant dense<0.000000e+00> : vector<8x128xf32>
    %152 = tpu.matmul %151, %2, %cst_64 {dimension_numbers = #tpu.dot_dimension_numbers<[1], [0], [0], [1], [0, 0, 1, 1], [], []>} : vector<8x128xbf16>, vector<128x128xbf16>, vector<8x128xf32> -> vector<8x128xf32>
    %153 = vector.broadcast %5 : vector<1x128xf32> to vector<8x128xf32>
    %154 = arith.addf %152, %153 : vector<8x128xf32>
    %cst_65 = arith.constant 0.000000e+00 : f32
    %155 = vector.broadcast %cst_65 : f32 to vector<8x128xf32>
    %156 = arith.cmpf ogt, %154, %155 : vector<8x128xf32>
    %cst_66 = arith.constant 0.00999999977 : f32
    %157 = vector.broadcast %cst_66 : f32 to vector<8x128xf32>
    %158 = arith.mulf %157, %154 : vector<8x128xf32>
    %159 = arith.select %156, %154, %158 : vector<8x128xi1>, vector<8x128xf32>
    %160 = arith.addf %130, %159 : vector<8x128xf32>
    %161 = arith.addf %160, %132 : vector<8x128xf32>
    %c0_67 = arith.constant 0 : index
    %c5 = arith.constant 5 : index
    %c0_68 = arith.constant 0 : index
    %162 = vector.load %arg1[%c0_67, %c5, %c0_68] : memref<8x10x128xf32, #tpu.memory_space<vmem>>, vector<8x1x128xf32>
    %163 = vector.shape_cast %162 : vector<8x1x128xf32> to vector<8x128xf32>
    %164 = arith.truncf %163 : vector<8x128xf32> to vector<8x128xbf16>
    %cst_69 = arith.constant dense<0.000000e+00> : vector<8x128xf32>
    %165 = tpu.matmul %164, %0, %cst_69 {dimension_numbers = #tpu.dot_dimension_numbers<[1], [0], [0], [1], [0, 0, 1, 1], [], []>} : vector<8x128xbf16>, vector<128x128xbf16>, vector<8x128xf32> -> vector<8x128xf32>
    %166 = vector.broadcast %3 : vector<1x128xf32> to vector<8x128xf32>
    %167 = arith.addf %165, %166 : vector<8x128xf32>
    %cst_70 = arith.constant 0.000000e+00 : f32
    %168 = vector.broadcast %cst_70 : f32 to vector<8x128xf32>
    %169 = arith.cmpf ogt, %167, %168 : vector<8x128xf32>
    %cst_71 = arith.constant 0.00999999977 : f32
    %170 = vector.broadcast %cst_71 : f32 to vector<8x128xf32>
    %171 = arith.mulf %170, %167 : vector<8x128xf32>
    %172 = arith.select %169, %167, %171 : vector<8x128xi1>, vector<8x128xf32>
    %173 = arith.truncf %172 : vector<8x128xf32> to vector<8x128xbf16>
    %cst_72 = arith.constant dense<0.000000e+00> : vector<8x128xf32>
    %174 = tpu.matmul %173, %1, %cst_72 {dimension_numbers = #tpu.dot_dimension_numbers<[1], [0], [0], [1], [0, 0, 1, 1], [], []>} : vector<8x128xbf16>, vector<128x128xbf16>, vector<8x128xf32> -> vector<8x128xf32>
    %175 = vector.broadcast %4 : vector<1x128xf32> to vector<8x128xf32>
    %176 = arith.addf %174, %175 : vector<8x128xf32>
    %cst_73 = arith.constant 0.000000e+00 : f32
    %177 = vector.broadcast %cst_73 : f32 to vector<8x128xf32>
    %178 = arith.cmpf ogt, %176, %177 : vector<8x128xf32>
    %cst_74 = arith.constant 0.00999999977 : f32
    %179 = vector.broadcast %cst_74 : f32 to vector<8x128xf32>
    %180 = arith.mulf %179, %176 : vector<8x128xf32>
    %181 = arith.select %178, %176, %180 : vector<8x128xi1>, vector<8x128xf32>
    %182 = arith.truncf %181 : vector<8x128xf32> to vector<8x128xbf16>
    %cst_75 = arith.constant dense<0.000000e+00> : vector<8x128xf32>
    %183 = tpu.matmul %182, %2, %cst_75 {dimension_numbers = #tpu.dot_dimension_numbers<[1], [0], [0], [1], [0, 0, 1, 1], [], []>} : vector<8x128xbf16>, vector<128x128xbf16>, vector<8x128xf32> -> vector<8x128xf32>
    %184 = vector.broadcast %5 : vector<1x128xf32> to vector<8x128xf32>
    %185 = arith.addf %183, %184 : vector<8x128xf32>
    %cst_76 = arith.constant 0.000000e+00 : f32
    %186 = vector.broadcast %cst_76 : f32 to vector<8x128xf32>
    %187 = arith.cmpf ogt, %185, %186 : vector<8x128xf32>
    %cst_77 = arith.constant 0.00999999977 : f32
    %188 = vector.broadcast %cst_77 : f32 to vector<8x128xf32>
    %189 = arith.mulf %188, %185 : vector<8x128xf32>
    %190 = arith.select %187, %185, %189 : vector<8x128xi1>, vector<8x128xf32>
    %191 = arith.addf %161, %190 : vector<8x128xf32>
    %192 = arith.addf %191, %163 : vector<8x128xf32>
    %c0_78 = arith.constant 0 : index
    %c6 = arith.constant 6 : index
    %c0_79 = arith.constant 0 : index
    %193 = vector.load %arg1[%c0_78, %c6, %c0_79] : memref<8x10x128xf32, #tpu.memory_space<vmem>>, vector<8x1x128xf32>
    %194 = vector.shape_cast %193 : vector<8x1x128xf32> to vector<8x128xf32>
    %195 = arith.truncf %194 : vector<8x128xf32> to vector<8x128xbf16>
    %cst_80 = arith.constant dense<0.000000e+00> : vector<8x128xf32>
    %196 = tpu.matmul %195, %0, %cst_80 {dimension_numbers = #tpu.dot_dimension_numbers<[1], [0], [0], [1], [0, 0, 1, 1], [], []>} : vector<8x128xbf16>, vector<128x128xbf16>, vector<8x128xf32> -> vector<8x128xf32>
    %197 = vector.broadcast %3 : vector<1x128xf32> to vector<8x128xf32>
    %198 = arith.addf %196, %197 : vector<8x128xf32>
    %cst_81 = arith.constant 0.000000e+00 : f32
    %199 = vector.broadcast %cst_81 : f32 to vector<8x128xf32>
    %200 = arith.cmpf ogt, %198, %199 : vector<8x128xf32>
    %cst_82 = arith.constant 0.00999999977 : f32
    %201 = vector.broadcast %cst_82 : f32 to vector<8x128xf32>
    %202 = arith.mulf %201, %198 : vector<8x128xf32>
    %203 = arith.select %200, %198, %202 : vector<8x128xi1>, vector<8x128xf32>
    %204 = arith.truncf %203 : vector<8x128xf32> to vector<8x128xbf16>
    %cst_83 = arith.constant dense<0.000000e+00> : vector<8x128xf32>
    %205 = tpu.matmul %204, %1, %cst_83 {dimension_numbers = #tpu.dot_dimension_numbers<[1], [0], [0], [1], [0, 0, 1, 1], [], []>} : vector<8x128xbf16>, vector<128x128xbf16>, vector<8x128xf32> -> vector<8x128xf32>
    %206 = vector.broadcast %4 : vector<1x128xf32> to vector<8x128xf32>
    %207 = arith.addf %205, %206 : vector<8x128xf32>
    %cst_84 = arith.constant 0.000000e+00 : f32
    %208 = vector.broadcast %cst_84 : f32 to vector<8x128xf32>
    %209 = arith.cmpf ogt, %207, %208 : vector<8x128xf32>
    %cst_85 = arith.constant 0.00999999977 : f32
    %210 = vector.broadcast %cst_85 : f32 to vector<8x128xf32>
    %211 = arith.mulf %210, %207 : vector<8x128xf32>
    %212 = arith.select %209, %207, %211 : vector<8x128xi1>, vector<8x128xf32>
    %213 = arith.truncf %212 : vector<8x128xf32> to vector<8x128xbf16>
    %cst_86 = arith.constant dense<0.000000e+00> : vector<8x128xf32>
    %214 = tpu.matmul %213, %2, %cst_86 {dimension_numbers = #tpu.dot_dimension_numbers<[1], [0], [0], [1], [0, 0, 1, 1], [], []>} : vector<8x128xbf16>, vector<128x128xbf16>, vector<8x128xf32> -> vector<8x128xf32>
    %215 = vector.broadcast %5 : vector<1x128xf32> to vector<8x128xf32>
    %216 = arith.addf %214, %215 : vector<8x128xf32>
    %cst_87 = arith.constant 0.000000e+00 : f32
    %217 = vector.broadcast %cst_87 : f32 to vector<8x128xf32>
    %218 = arith.cmpf ogt, %216, %217 : vector<8x128xf32>
    %cst_88 = arith.constant 0.00999999977 : f32
    %219 = vector.broadcast %cst_88 : f32 to vector<8x128xf32>
    %220 = arith.mulf %219, %216 : vector<8x128xf32>
    %221 = arith.select %218, %216, %220 : vector<8x128xi1>, vector<8x128xf32>
    %222 = arith.addf %192, %221 : vector<8x128xf32>
    %223 = arith.addf %222, %194 : vector<8x128xf32>
    %c0_89 = arith.constant 0 : index
    %c7 = arith.constant 7 : index
    %c0_90 = arith.constant 0 : index
    %224 = vector.load %arg1[%c0_89, %c7, %c0_90] : memref<8x10x128xf32, #tpu.memory_space<vmem>>, vector<8x1x128xf32>
    %225 = vector.shape_cast %224 : vector<8x1x128xf32> to vector<8x128xf32>
    %226 = arith.truncf %225 : vector<8x128xf32> to vector<8x128xbf16>
    %cst_91 = arith.constant dense<0.000000e+00> : vector<8x128xf32>
    %227 = tpu.matmul %226, %0, %cst_91 {dimension_numbers = #tpu.dot_dimension_numbers<[1], [0], [0], [1], [0, 0, 1, 1], [], []>} : vector<8x128xbf16>, vector<128x128xbf16>, vector<8x128xf32> -> vector<8x128xf32>
    %228 = vector.broadcast %3 : vector<1x128xf32> to vector<8x128xf32>
    %229 = arith.addf %227, %228 : vector<8x128xf32>
    %cst_92 = arith.constant 0.000000e+00 : f32
    %230 = vector.broadcast %cst_92 : f32 to vector<8x128xf32>
    %231 = arith.cmpf ogt, %229, %230 : vector<8x128xf32>
    %cst_93 = arith.constant 0.00999999977 : f32
    %232 = vector.broadcast %cst_93 : f32 to vector<8x128xf32>
    %233 = arith.mulf %232, %229 : vector<8x128xf32>
    %234 = arith.select %231, %229, %233 : vector<8x128xi1>, vector<8x128xf32>
    %235 = arith.truncf %234 : vector<8x128xf32> to vector<8x128xbf16>
    %cst_94 = arith.constant dense<0.000000e+00> : vector<8x128xf32>
    %236 = tpu.matmul %235, %1, %cst_94 {dimension_numbers = #tpu.dot_dimension_numbers<[1], [0], [0], [1], [0, 0, 1, 1], [], []>} : vector<8x128xbf16>, vector<128x128xbf16>, vector<8x128xf32> -> vector<8x128xf32>
    %237 = vector.broadcast %4 : vector<1x128xf32> to vector<8x128xf32>
    %238 = arith.addf %236, %237 : vector<8x128xf32>
    %cst_95 = arith.constant 0.000000e+00 : f32
    %239 = vector.broadcast %cst_95 : f32 to vector<8x128xf32>
    %240 = arith.cmpf ogt, %238, %239 : vector<8x128xf32>
    %cst_96 = arith.constant 0.00999999977 : f32
    %241 = vector.broadcast %cst_96 : f32 to vector<8x128xf32>
    %242 = arith.mulf %241, %238 : vector<8x128xf32>
    %243 = arith.select %240, %238, %242 : vector<8x128xi1>, vector<8x128xf32>
    %244 = arith.truncf %243 : vector<8x128xf32> to vector<8x128xbf16>
    %cst_97 = arith.constant dense<0.000000e+00> : vector<8x128xf32>
    %245 = tpu.matmul %244, %2, %cst_97 {dimension_numbers = #tpu.dot_dimension_numbers<[1], [0], [0], [1], [0, 0, 1, 1], [], []>} : vector<8x128xbf16>, vector<128x128xbf16>, vector<8x128xf32> -> vector<8x128xf32>
    %246 = vector.broadcast %5 : vector<1x128xf32> to vector<8x128xf32>
    %247 = arith.addf %245, %246 : vector<8x128xf32>
    %cst_98 = arith.constant 0.000000e+00 : f32
    %248 = vector.broadcast %cst_98 : f32 to vector<8x128xf32>
    %249 = arith.cmpf ogt, %247, %248 : vector<8x128xf32>
    %cst_99 = arith.constant 0.00999999977 : f32
    %250 = vector.broadcast %cst_99 : f32 to vector<8x128xf32>
    %251 = arith.mulf %250, %247 : vector<8x128xf32>
    %252 = arith.select %249, %247, %251 : vector<8x128xi1>, vector<8x128xf32>
    %253 = arith.addf %223, %252 : vector<8x128xf32>
    %254 = arith.addf %253, %225 : vector<8x128xf32>
    %c0_100 = arith.constant 0 : index
    %c8 = arith.constant 8 : index
    %c0_101 = arith.constant 0 : index
    %255 = vector.load %arg1[%c0_100, %c8, %c0_101] : memref<8x10x128xf32, #tpu.memory_space<vmem>>, vector<8x1x128xf32>
    %256 = vector.shape_cast %255 : vector<8x1x128xf32> to vector<8x128xf32>
    %257 = arith.truncf %256 : vector<8x128xf32> to vector<8x128xbf16>
    %cst_102 = arith.constant dense<0.000000e+00> : vector<8x128xf32>
    %258 = tpu.matmul %257, %0, %cst_102 {dimension_numbers = #tpu.dot_dimension_numbers<[1], [0], [0], [1], [0, 0, 1, 1], [], []>} : vector<8x128xbf16>, vector<128x128xbf16>, vector<8x128xf32> -> vector<8x128xf32>
    %259 = vector.broadcast %3 : vector<1x128xf32> to vector<8x128xf32>
    %260 = arith.addf %258, %259 : vector<8x128xf32>
    %cst_103 = arith.constant 0.000000e+00 : f32
    %261 = vector.broadcast %cst_103 : f32 to vector<8x128xf32>
    %262 = arith.cmpf ogt, %260, %261 : vector<8x128xf32>
    %cst_104 = arith.constant 0.00999999977 : f32
    %263 = vector.broadcast %cst_104 : f32 to vector<8x128xf32>
    %264 = arith.mulf %263, %260 : vector<8x128xf32>
    %265 = arith.select %262, %260, %264 : vector<8x128xi1>, vector<8x128xf32>
    %266 = arith.truncf %265 : vector<8x128xf32> to vector<8x128xbf16>
    %cst_105 = arith.constant dense<0.000000e+00> : vector<8x128xf32>
    %267 = tpu.matmul %266, %1, %cst_105 {dimension_numbers = #tpu.dot_dimension_numbers<[1], [0], [0], [1], [0, 0, 1, 1], [], []>} : vector<8x128xbf16>, vector<128x128xbf16>, vector<8x128xf32> -> vector<8x128xf32>
    %268 = vector.broadcast %4 : vector<1x128xf32> to vector<8x128xf32>
    %269 = arith.addf %267, %268 : vector<8x128xf32>
    %cst_106 = arith.constant 0.000000e+00 : f32
    %270 = vector.broadcast %cst_106 : f32 to vector<8x128xf32>
    %271 = arith.cmpf ogt, %269, %270 : vector<8x128xf32>
    %cst_107 = arith.constant 0.00999999977 : f32
    %272 = vector.broadcast %cst_107 : f32 to vector<8x128xf32>
    %273 = arith.mulf %272, %269 : vector<8x128xf32>
    %274 = arith.select %271, %269, %273 : vector<8x128xi1>, vector<8x128xf32>
    %275 = arith.truncf %274 : vector<8x128xf32> to vector<8x128xbf16>
    %cst_108 = arith.constant dense<0.000000e+00> : vector<8x128xf32>
    %276 = tpu.matmul %275, %2, %cst_108 {dimension_numbers = #tpu.dot_dimension_numbers<[1], [0], [0], [1], [0, 0, 1, 1], [], []>} : vector<8x128xbf16>, vector<128x128xbf16>, vector<8x128xf32> -> vector<8x128xf32>
    %277 = vector.broadcast %5 : vector<1x128xf32> to vector<8x128xf32>
    %278 = arith.addf %276, %277 : vector<8x128xf32>
    %cst_109 = arith.constant 0.000000e+00 : f32
    %279 = vector.broadcast %cst_109 : f32 to vector<8x128xf32>
    %280 = arith.cmpf ogt, %278, %279 : vector<8x128xf32>
    %cst_110 = arith.constant 0.00999999977 : f32
    %281 = vector.broadcast %cst_110 : f32 to vector<8x128xf32>
    %282 = arith.mulf %281, %278 : vector<8x128xf32>
    %283 = arith.select %280, %278, %282 : vector<8x128xi1>, vector<8x128xf32>
    %284 = arith.addf %254, %283 : vector<8x128xf32>
    %285 = arith.addf %284, %256 : vector<8x128xf32>
    %c0_111 = arith.constant 0 : index
    %c9 = arith.constant 9 : index
    %c0_112 = arith.constant 0 : index
    %286 = vector.load %arg1[%c0_111, %c9, %c0_112] : memref<8x10x128xf32, #tpu.memory_space<vmem>>, vector<8x1x128xf32>
    %287 = vector.shape_cast %286 : vector<8x1x128xf32> to vector<8x128xf32>
    %288 = arith.truncf %287 : vector<8x128xf32> to vector<8x128xbf16>
    %cst_113 = arith.constant dense<0.000000e+00> : vector<8x128xf32>
    %289 = tpu.matmul %288, %0, %cst_113 {dimension_numbers = #tpu.dot_dimension_numbers<[1], [0], [0], [1], [0, 0, 1, 1], [], []>} : vector<8x128xbf16>, vector<128x128xbf16>, vector<8x128xf32> -> vector<8x128xf32>
    %290 = vector.broadcast %3 : vector<1x128xf32> to vector<8x128xf32>
    %291 = arith.addf %289, %290 : vector<8x128xf32>
    %cst_114 = arith.constant 0.000000e+00 : f32
    %292 = vector.broadcast %cst_114 : f32 to vector<8x128xf32>
    %293 = arith.cmpf ogt, %291, %292 : vector<8x128xf32>
    %cst_115 = arith.constant 0.00999999977 : f32
    %294 = vector.broadcast %cst_115 : f32 to vector<8x128xf32>
    %295 = arith.mulf %294, %291 : vector<8x128xf32>
    %296 = arith.select %293, %291, %295 : vector<8x128xi1>, vector<8x128xf32>
    %297 = arith.truncf %296 : vector<8x128xf32> to vector<8x128xbf16>
    %cst_116 = arith.constant dense<0.000000e+00> : vector<8x128xf32>
    %298 = tpu.matmul %297, %1, %cst_116 {dimension_numbers = #tpu.dot_dimension_numbers<[1], [0], [0], [1], [0, 0, 1, 1], [], []>} : vector<8x128xbf16>, vector<128x128xbf16>, vector<8x128xf32> -> vector<8x128xf32>
    %299 = vector.broadcast %4 : vector<1x128xf32> to vector<8x128xf32>
    %300 = arith.addf %298, %299 : vector<8x128xf32>
    %cst_117 = arith.constant 0.000000e+00 : f32
    %301 = vector.broadcast %cst_117 : f32 to vector<8x128xf32>
    %302 = arith.cmpf ogt, %300, %301 : vector<8x128xf32>
    %cst_118 = arith.constant 0.00999999977 : f32
    %303 = vector.broadcast %cst_118 : f32 to vector<8x128xf32>
    %304 = arith.mulf %303, %300 : vector<8x128xf32>
    %305 = arith.select %302, %300, %304 : vector<8x128xi1>, vector<8x128xf32>
    %306 = arith.truncf %305 : vector<8x128xf32> to vector<8x128xbf16>
    %cst_119 = arith.constant dense<0.000000e+00> : vector<8x128xf32>
    %307 = tpu.matmul %306, %2, %cst_119 {dimension_numbers = #tpu.dot_dimension_numbers<[1], [0], [0], [1], [0, 0, 1, 1], [], []>} : vector<8x128xbf16>, vector<128x128xbf16>, vector<8x128xf32> -> vector<8x128xf32>
    %308 = vector.broadcast %5 : vector<1x128xf32> to vector<8x128xf32>
    %309 = arith.addf %307, %308 : vector<8x128xf32>
    %cst_120 = arith.constant 0.000000e+00 : f32
    %310 = vector.broadcast %cst_120 : f32 to vector<8x128xf32>
    %311 = arith.cmpf ogt, %309, %310 : vector<8x128xf32>
    %cst_121 = arith.constant 0.00999999977 : f32
    %312 = vector.broadcast %cst_121 : f32 to vector<8x128xf32>
    %313 = arith.mulf %312, %309 : vector<8x128xf32>
    %314 = arith.select %311, %309, %313 : vector<8x128xi1>, vector<8x128xf32>
    %315 = arith.addf %285, %314 : vector<8x128xf32>
    %316 = arith.addf %315, %287 : vector<8x128xf32>
    %cst_122 = arith.constant 1.000000e-01 : f32
    %317 = vector.broadcast %cst_122 : f32 to vector<8x128xf32>
    %318 = arith.mulf %316, %317 : vector<8x128xf32>
    %319 = arith.truncf %318 : vector<8x128xf32> to vector<8x128xbf16>
    %c0_123 = arith.constant 0 : index
    %c0_124 = arith.constant 0 : index
    %320 = vector.load %arg8[%c0_123, %c0_124] : memref<128x128xbf16, #tpu.memory_space<vmem>>, vector<128x128xbf16>
    %cst_125 = arith.constant dense<0.000000e+00> : vector<8x128xf32>
    %321 = tpu.matmul %319, %320, %cst_125 {dimension_numbers = #tpu.dot_dimension_numbers<[1], [0], [0], [1], [0, 0, 1, 1], [], []>} : vector<8x128xbf16>, vector<128x128xbf16>, vector<8x128xf32> -> vector<8x128xf32>
    %c0_126 = arith.constant 0 : index
    %c0_127 = arith.constant 0 : index
    %322 = vector.load %arg9[%c0_126, %c0_127] : memref<1x128xf32, #tpu.memory_space<vmem>>, vector<1x128xf32>
    %323 = vector.broadcast %322 : vector<1x128xf32> to vector<8x128xf32>
    %324 = arith.addf %321, %323 : vector<8x128xf32>
    %cst_128 = arith.constant 0.000000e+00 : f32
    %325 = vector.broadcast %cst_128 : f32 to vector<8x128xf32>
    %326 = arith.subf %325, %324 : vector<8x128xf32>
    %327 = math.exp %326 : vector<8x128xf32>
    %cst_129 = arith.constant 1.000000e+00 : f32
    %328 = vector.broadcast %cst_129 : f32 to vector<8x128xf32>
    %329 = arith.addf %328, %327 : vector<8x128xf32>
    %cst_130 = arith.constant 1.000000e+00 : f32
    %330 = vector.broadcast %cst_130 : f32 to vector<8x128xf32>
    %331 = arith.divf %330, %329 : vector<8x128xf32>
    %c0_131 = arith.constant 0 : index
    %c0_132 = arith.constant 0 : index
    %332 = vector.load %arg10[%c0_131, %c0_132] : memref<8x128xf32, #tpu.memory_space<vmem>>, vector<8x128xf32>
    tpu.vector_store %arg10[%c0_131, %c0_132], %331 {strides = array<i32>} : memref<8x128xf32, #tpu.memory_space<vmem>>, vector<8x128xf32>,
    return
  }
  func.func @transform_0(%arg0: i32) -> (i32, i32, i32) {
    %c0_i32 = arith.constant 0 : i32
    %c0_i32_0 = arith.constant 0 : i32
    %c0_i32_1 = arith.constant 0 : i32
    return %arg0, %c0_i32, %c0_i32_0 : i32, i32, i32
  }
  func.func @transform_1(%arg0: i32) -> (i32, i32) {
    %c0_i32 = arith.constant 0 : i32
    %c0_i32_0 = arith.constant 0 : i32
    %c0_i32_1 = arith.constant 0 : i32
    return %c0_i32, %c0_i32_0 : i32, i32
  }
  func.func @transform_2(%arg0: i32) -> (i32, i32) {
    %c0_i32 = arith.constant 0 : i32
    %c0_i32_0 = arith.constant 0 : i32
    %c0_i32_1 = arith.constant 0 : i32
    return %c0_i32, %c0_i32_0 : i32, i32
  }
  func.func @transform_3(%arg0: i32) -> (i32, i32) {
    %c0_i32 = arith.constant 0 : i32
    %c0_i32_0 = arith.constant 0 : i32
    %c0_i32_1 = arith.constant 0 : i32
    return %c0_i32, %c0_i32_0 : i32, i32
  }
  func.func @transform_4(%arg0: i32) -> (i32, i32) {
    %c0_i32 = arith.constant 0 : i32
    %c0_i32_0 = arith.constant 0 : i32
    %c0_i32_1 = arith.constant 0 : i32
    return %c0_i32, %c0_i32_0 : i32, i32
  }
  func.func @transform_5(%arg0: i32) -> (i32, i32) {
    %c0_i32 = arith.constant 0 : i32
    %c0_i32_0 = arith.constant 0 : i32
    %c0_i32_1 = arith.constant 0 : i32
    return %c0_i32, %c0_i32_0 : i32, i32
  }
  func.func @transform_6(%arg0: i32) -> (i32, i32) {
    %c0_i32 = arith.constant 0 : i32
    %c0_i32_0 = arith.constant 0 : i32
    %c0_i32_1 = arith.constant 0 : i32
    return %c0_i32, %c0_i32_0 : i32, i32
  }
  func.func @transform_7(%arg0: i32) -> (i32, i32) {
    %c0_i32 = arith.constant 0 : i32
    %c0_i32_0 = arith.constant 0 : i32
    %c0_i32_1 = arith.constant 0 : i32
    return %c0_i32, %c0_i32_0 : i32, i32
  }
  func.func @transform_8(%arg0: i32) -> (i32, i32) {
    %c0_i32 = arith.constant 0 : i32
    %c0_i32_0 = arith.constant 0 : i32
    %c0_i32_1 = arith.constant 0 : i32
    return %c0_i32, %c0_i32_0 : i32, i32
  }
  func.func @transform_9(%arg0: i32) -> (i32, i32) {
    %c0_i32 = arith.constant 0 : i32
    %c0_i32_0 = arith.constant 0 : i32
    return %arg0, %c0_i32 : i32, i32
  }
}

</mosaic_0001>

<llo_original>
// kernel: tpu_custom_call.1
$region0: #{tpu_custom_call.1}
  #allocation0 [shape = 'u32[]', space=smem, size = 0x4, offset = 0x4, fixed_abs, tag = 'smem constant byte address 0x4 - core index']
  #allocation1 [shape = 'u32[72,128]{1,0:T(1,128)}', space=vmem, size = 0x9000, scoped, tag = 'internal scratch']
  %s0 = inlined_call_operand.vmem [shape: f32[16,10,128], index: 0, kind: input, shape index: {}]
  %s1 = inlined_call_operand.vmem [shape: bf16[128,128], index: 1, kind: input, shape index: {}]
  %s2 = inlined_call_operand.vmem [shape: f32[1,128], index: 2, kind: input, shape index: {}]
  %s3 = inlined_call_operand.vmem [shape: bf16[128,128], index: 3, kind: input, shape index: {}]
  %s4 = inlined_call_operand.vmem [shape: f32[1,128], index: 4, kind: input, shape index: {}]
  %s5 = inlined_call_operand.vmem [shape: bf16[128,128], index: 5, kind: input, shape index: {}]
  %s6 = inlined_call_operand.vmem [shape: f32[1,128], index: 6, kind: input, shape index: {}]
  %s7 = inlined_call_operand.vmem [shape: bf16[128,128], index: 7, kind: input, shape index: {}]
  %s8 = inlined_call_operand.vmem [shape: f32[1,128], index: 8, kind: input, shape index: {}]
  %s9 = inlined_call_operand.hbm [shape: f32[16,128], index: 9, kind: output, shape index: {}]
  %s10 = sld [smem:[#allocation0]]
  $region69: #{tpu_custom_call.1} parent=0
    _
  %s12 = ssub.s32 1, %s10
  %s13 = scalar_select 0, %s12, %s10
  $region1: #{tpu_custom_call.1} parent=0
    #allocation2 [shape = 'u8[8192]{0}', space=vmem, size = 0x2000, scoped, tag = 'output window, operand 0']
    #allocation3 [shape = 's32[2]{0}', space=sflag, size = 0x8, scoped, tag = 'scoped memory for tpu_custom_call.1']
    %14 = vsyncpa [#allocation3], 0
    %s15 = scalar_lea.sflag [#allocation3], 1
    %16 = vsyncpa %s15, 0
    loop: start=0, step=1, limit=4
    $region2: #{tpu_custom_call.1} parent=1 // loop_pre_header
      _
    $region3: #{tpu_custom_call.1} parent=1 // loop_header
      %s18 = sphi 0, %s22
      %p19 = scmp.ge.s32.totalorder %s18, 4
      %s28 = sphi 0, %s30
      %s31 = sphi 0, %s28
      %s32 = sphi 0, %s31
      %s48 = sphi 0, %s32
      %s52 = sphi 0, %s52
      %s54 = sphi 0, %s52
      %s55 = sphi 0, %s54
      %s69 = sphi 0, %s55
      %s73 = sphi 0, %s73
      %s75 = sphi 0, %s73
      %s76 = sphi 0, %s75
      %s90 = sphi 0, %s76
      %s94 = sphi 0, %s94
      %s96 = sphi 0, %s94
      %s97 = sphi 0, %s96
      %s111 = sphi 0, %s97
      %s115 = sphi 0, %s115
      %s117 = sphi 0, %s115
      %s118 = sphi 0, %s117
      %s132 = sphi 0, %s118
      %s136 = sphi 0, %s136
      %s138 = sphi 0, %s136
      %s139 = sphi 0, %s138
      %s153 = sphi 0, %s139
      %s157 = sphi 0, %s157
      %s159 = sphi 0, %s157
      %s160 = sphi 0, %s159
      %s174 = sphi 0, %s160
      %s178 = sphi 0, %s178
      %s180 = sphi 0, %s178
      %s181 = sphi 0, %s180
      %s195 = sphi 0, %s181
      %s199 = sphi 0, %s199
      %s201 = sphi 0, %s199
      %s202 = sphi 0, %s201
      %s216 = sphi 0, %s202
      %s222 = sphi 0, %s224
      %s225 = sphi 0, %s222
      %s226 = sphi 0, %s225
      %s242 = sphi 0, %s226
    $region4: #{tpu_custom_call.1} parent=1 // loop_header_branch
      %21 = sbr.rel (%p19) target = $region8
    $region5: #{tpu_custom_call.1} parent=1 // loop_body
      %s23 = ssub.s32 %s18, 1
      %s24 = ssub.s32 %s18, 2
      %s25 = sadd.s32 %s18, 1
      %s26 = ssub.s32 %s18, %s25
      %p27 = scmp.eq.s32.totalorder %s26, 0
      %s29 = sadd.s32 %s28, 1
      %s30 = scalar_select %p27, %s28, %s29
      %p33 = pneg %p27
      %p34 = scmp.eq.s32.totalorder %s18, 1
      %p35 = por %p33, %p34
      %p36 = scmp.ne.s32.totalorder %s28, %s31
      %p37 = scmp.eq.s32.totalorder %s18, 0
      %p38 = por %p36, %p37
      %p39 = scmp.ne.s32.totalorder %s28, %s31
      %p40 = scmp.eq.s32.totalorder %s23, 1
      %p41 = por %p39, %p40
      %p42 = scmp.ne.s32.totalorder %s31, %s32
      %p43 = scmp.eq.s32.totalorder %s23, 0
      %p44 = por %p42, %p43
      %p45 = scmp.ne.s32.totalorder %s31, %s32
      %p46 = scmp.eq.s32.totalorder %s24, 1
      %p47 = por %p45, %p46
      %p49 = scmp.ne.s32.totalorder %s32, %s48
      %p50 = scmp.eq.s32.totalorder %s24, 0
      %p51 = por %p49, %p50
      %s53 = sadd.s32 %s52, 1
      %p56 = scmp.eq.s32.totalorder %s18, 1
      %p57 = scmp.ne.s32.totalorder %s52, %s54
      %p58 = scmp.eq.s32.totalorder %s18, 0
      %p59 = por %p57, %p58
      %p60 = scmp.ne.s32.totalorder %s52, %s54
      %p61 = scmp.eq.s32.totalorder %s23, 1
      %p62 = por %p60, %p61
      %p63 = scmp.ne.s32.totalorder %s54, %s55
      %p64 = scmp.eq.s32.totalorder %s23, 0
      %p65 = por %p63, %p64
      %p66 = scmp.ne.s32.totalorder %s54, %s55
      %p67 = scmp.eq.s32.totalorder %s24, 1
      %p68 = por %p66, %p67
      %p70 = scmp.ne.s32.totalorder %s55, %s69
      %p71 = scmp.eq.s32.totalorder %s24, 0
      %p72 = por %p70, %p71
      %s74 = sadd.s32 %s73, 1
      %p77 = scmp.eq.s32.totalorder %s18, 1
      %p78 = scmp.ne.s32.totalorder %s73, %s75
      %p79 = scmp.eq.s32.totalorder %s18, 0
      %p80 = por %p78, %p79
      %p81 = scmp.ne.s32.totalorder %s73, %s75
      %p82 = scmp.eq.s32.totalorder %s23, 1
      %p83 = por %p81, %p82
      %p84 = scmp.ne.s32.totalorder %s75, %s76
      %p85 = scmp.eq.s32.totalorder %s23, 0
      %p86 = por %p84, %p85
      %p87 = scmp.ne.s32.totalorder %s75, %s76
      %p88 = scmp.eq.s32.totalorder %s24, 1
      %p89 = por %p87, %p88
      %p91 = scmp.ne.s32.totalorder %s76, %s90
      %p92 = scmp.eq.s32.totalorder %s24, 0
      %p93 = por %p91, %p92
      %s95 = sadd.s32 %s94, 1
      %p98 = scmp.eq.s32.totalorder %s18, 1
      %p99 = scmp.ne.s32.totalorder %s94, %s96
      %p100 = scmp.eq.s32.totalorder %s18, 0
      %p101 = por %p99, %p100
      %p102 = scmp.ne.s32.totalorder %s94, %s96
      %p103 = scmp.eq.s32.totalorder %s23, 1
      %p104 = por %p102, %p103
      %p105 = scmp.ne.s32.totalorder %s96, %s97
      %p106 = scmp.eq.s32.totalorder %s23, 0
      %p107 = por %p105, %p106
      %p108 = scmp.ne.s32.totalorder %s96, %s97
      %p109 = scmp.eq.s32.totalorder %s24, 1
      %p110 = por %p108, %p109
      %p112 = scmp.ne.s32.totalorder %s97, %s111
      %p113 = scmp.eq.s32.totalorder %s24, 0
      %p114 = por %p112, %p113
      %s116 = sadd.s32 %s115, 1
      %p119 = scmp.eq.s32.totalorder %s18, 1
      %p120 = scmp.ne.s32.totalorder %s115, %s117
      %p121 = scmp.eq.s32.totalorder %s18, 0
      %p122 = por %p120, %p121
      %p123 = scmp.ne.s32.totalorder %s115, %s117
      %p124 = scmp.eq.s32.totalorder %s23, 1
      %p125 = por %p123, %p124
      %p126 = scmp.ne.s32.totalorder %s117, %s118
      %p127 = scmp.eq.s32.totalorder %s23, 0
      %p128 = por %p126, %p127
      %p129 = scmp.ne.s32.totalorder %s117, %s118
      %p130 = scmp.eq.s32.totalorder %s24, 1
      %p131 = por %p129, %p130
      %p133 = scmp.ne.s32.totalorder %s118, %s132
      %p134 = scmp.eq.s32.totalorder %s24, 0
      %p135 = por %p133, %p134
      %s137 = sadd.s32 %s136, 1
      %p140 = scmp.eq.s32.totalorder %s18, 1
      %p141 = scmp.ne.s32.totalorder %s136, %s138
      %p142 = scmp.eq.s32.totalorder %s18, 0
      %p143 = por %p141, %p142
      %p144 = scmp.ne.s32.totalorder %s136, %s138
      %p145 = scmp.eq.s32.totalorder %s23, 1
      %p146 = por %p144, %p145
      %p147 = scmp.ne.s32.totalorder %s138, %s139
      %p148 = scmp.eq.s32.totalorder %s23, 0
      %p149 = por %p147, %p148
      %p150 = scmp.ne.s32.totalorder %s138, %s139
      %p151 = scmp.eq.s32.totalorder %s24, 1
      %p152 = por %p150, %p151
      %p154 = scmp.ne.s32.totalorder %s139, %s153
      %p155 = scmp.eq.s32.totalorder %s24, 0
      %p156 = por %p154, %p155
      %s158 = sadd.s32 %s157, 1
      %p161 = scmp.eq.s32.totalorder %s18, 1
      %p162 = scmp.ne.s32.totalorder %s157, %s159
      %p163 = scmp.eq.s32.totalorder %s18, 0
      %p164 = por %p162, %p163
      %p165 = scmp.ne.s32.totalorder %s157, %s159
      %p166 = scmp.eq.s32.totalorder %s23, 1
      %p167 = por %p165, %p166
      %p168 = scmp.ne.s32.totalorder %s159, %s160
      %p169 = scmp.eq.s32.totalorder %s23, 0
      %p170 = por %p168, %p169
      %p171 = scmp.ne.s32.totalorder %s159, %s160
      %p172 = scmp.eq.s32.totalorder %s24, 1
      %p173 = por %p171, %p172
      %p175 = scmp.ne.s32.totalorder %s160, %s174
      %p176 = scmp.eq.s32.totalorder %s24, 0
      %p177 = por %p175, %p176
      %s179 = sadd.s32 %s178, 1
      %p182 = scmp.eq.s32.totalorder %s18, 1
      %p183 = scmp.ne.s32.totalorder %s178, %s180
      %p184 = scmp.eq.s32.totalorder %s18, 0
      %p185 = por %p183, %p184
      %p186 = scmp.ne.s32.totalorder %s178, %s180
      %p187 = scmp.eq.s32.totalorder %s23, 1
      %p188 = por %p186, %p187
      %p189 = scmp.ne.s32.totalorder %s180, %s181
      %p190 = scmp.eq.s32.totalorder %s23, 0
      %p191 = por %p189, %p190
      %p192 = scmp.ne.s32.totalorder %s180, %s181
      %p193 = scmp.eq.s32.totalorder %s24, 1
      %p194 = por %p192, %p193
      %p196 = scmp.ne.s32.totalorder %s181, %s195
      %p197 = scmp.eq.s32.totalorder %s24, 0
      %p198 = por %p196, %p197
      %s200 = sadd.s32 %s199, 1
      %p203 = scmp.eq.s32.totalorder %s18, 1
      %p204 = scmp.ne.s32.totalorder %s199, %s201
      %p205 = scmp.eq.s32.totalorder %s18, 0
      %p206 = por %p204, %p205
      %p207 = scmp.ne.s32.totalorder %s199, %s201
      %p208 = scmp.eq.s32.totalorder %s23, 1
      %p209 = por %p207, %p208
      %p210 = scmp.ne.s32.totalorder %s201, %s202
      %p211 = scmp.eq.s32.totalorder %s23, 0
      %p212 = por %p210, %p211
      %p213 = scmp.ne.s32.totalorder %s201, %s202
      %p214 = scmp.eq.s32.totalorder %s24, 1
      %p215 = por %p213, %p214
      %p217 = scmp.ne.s32.totalorder %s202, %s216
      %p218 = scmp.eq.s32.totalorder %s24, 0
      %p219 = por %p217, %p218
      %s220 = ssub.s32 %s18, %s25
      %p221 = scmp.eq.s32.totalorder %s220, 0
      %s223 = sadd.s32 %s222, 1
      %s224 = scalar_select %p221, %s222, %s223
      %p227 = pneg %p221
      %p228 = scmp.eq.s32.totalorder %s18, 1
      %p229 = por %p227, %p228
      %p230 = scmp.ne.s32.totalorder %s222, %s225
      %p231 = scmp.eq.s32.totalorder %s18, 0
      %p232 = por %p230, %p231
      %p233 = scmp.ne.s32.totalorder %s222, %s225
      %p234 = scmp.eq.s32.totalorder %s23, 1
      %p235 = por %p233, %p234
      %p236 = scmp.ne.s32.totalorder %s225, %s226
      %p237 = scmp.eq.s32.totalorder %s23, 0
      %p238 = por %p236, %p237
      %p239 = scmp.ne.s32.totalorder %s225, %s226
      %p240 = scmp.eq.s32.totalorder %s24, 1
      %p241 = por %p239, %p240
      %p243 = scmp.ne.s32.totalorder %s226, %s242
      %p244 = scmp.eq.s32.totalorder %s24, 0
      %p245 = por %p243, %p244
      %p246 = scmp.le.s32.totalorder 1, %s18
      %p247 = scmp.lt.s32.totalorder %s18, 3
      %p248 = pnand %p246, %p247
      %p249 = pneg %p248
      // Predicated region
      $region9: #{tpu_custom_call.1} parent=5 // pred_check
        _
      $region10: #{tpu_custom_call.1} parent=5 // pred_check_branch
        %251 = sbr.rel (%p248) target = $region12
      $region11: #{tpu_custom_call.1} parent=5 // pred_region
        %s252 = ssub.s32 %s18, 1
        // Predicated region
        $region13: #{tpu_custom_call.1} parent=11 // pred_check
          %p253 = pneg %p65
        $region14: #{tpu_custom_call.1} parent=11 // pred_check_branch
          %255 = sbr.rel (%p253) target = $region16
        $region15: #{tpu_custom_call.1} parent=11 // pred_region
          _
        $region16: #{tpu_custom_call.1} parent=11 // pred_fallthru
          _
        // Predicated region
        $region17: #{tpu_custom_call.1} parent=11 // pred_check
          %p256 = pneg %p86
        $region18: #{tpu_custom_call.1} parent=11 // pred_check_branch
          %258 = sbr.rel (%p256) target = $region20
        $region19: #{tpu_custom_call.1} parent=11 // pred_region
          _
        $region20: #{tpu_custom_call.1} parent=11 // pred_fallthru
          _
        // Predicated region
        $region21: #{tpu_custom_call.1} parent=11 // pred_check
          %p259 = pneg %p107
        $region22: #{tpu_custom_call.1} parent=11 // pred_check_branch
          %261 = sbr.rel (%p259) target = $region24
        $region23: #{tpu_custom_call.1} parent=11 // pred_region
          _
        $region24: #{tpu_custom_call.1} parent=11 // pred_fallthru
          _
        // Predicated region
        $region25: #{tpu_custom_call.1} parent=11 // pred_check
          %p262 = pneg %p128
        $region26: #{tpu_custom_call.1} parent=11 // pred_check_branch
          %264 = sbr.rel (%p262) target = $region28
        $region27: #{tpu_custom_call.1} parent=11 // pred_region
          _
        $region28: #{tpu_custom_call.1} parent=11 // pred_fallthru
          _
        // Predicated region
        $region29: #{tpu_custom_call.1} parent=11 // pred_check
          %p265 = pneg %p149
        $region30: #{tpu_custom_call.1} parent=11 // pred_check_branch
          %267 = sbr.rel (%p265) target = $region32
        $region31: #{tpu_custom_call.1} parent=11 // pred_region
          _
        $region32: #{tpu_custom_call.1} parent=11 // pred_fallthru
          _
        // Predicated region
        $region33: #{tpu_custom_call.1} parent=11 // pred_check
          %p268 = pneg %p170
        $region34: #{tpu_custom_call.1} parent=11 // pred_check_branch
          %270 = sbr.rel (%p268) target = $region36
        $region35: #{tpu_custom_call.1} parent=11 // pred_region
          _
        $region36: #{tpu_custom_call.1} parent=11 // pred_fallthru
          _
        // Predicated region
        $region37: #{tpu_custom_call.1} parent=11 // pred_check
          %p271 = pneg %p191
        $region38: #{tpu_custom_call.1} parent=11 // pred_check_branch
          %273 = sbr.rel (%p271) target = $region40
        $region39: #{tpu_custom_call.1} parent=11 // pred_region
          _
        $region40: #{tpu_custom_call.1} parent=11 // pred_fallthru
          _
        // Predicated region
        $region41: #{tpu_custom_call.1} parent=11 // pred_check
          %p274 = pneg %p212
        $region42: #{tpu_custom_call.1} parent=11 // pred_check_branch
          %276 = sbr.rel (%p274) target = $region44
        $region43: #{tpu_custom_call.1} parent=11 // pred_region
          _
        $region44: #{tpu_custom_call.1} parent=11 // pred_fallthru
          _
      $region12: #{tpu_custom_call.1} parent=5 // pred_fallthru
        _
      %p277 = scmp.lt.s32.totalorder %s18, 2
      // Predicated region
      $region45: #{tpu_custom_call.1} parent=5 // pred_check
        %p278 = pneg %p277
      $region46: #{tpu_custom_call.1} parent=5 // pred_check_branch
        %280 = sbr.rel (%p278) target = $region48
      $region47: #{tpu_custom_call.1} parent=5 // pred_region
        // Predicated region
        $region49: #{tpu_custom_call.1} parent=47 // pred_check
          %p281 = pneg %p38
        $region50: #{tpu_custom_call.1} parent=47 // pred_check_branch
          %283 = sbr.rel (%p281) target = $region52
        $region51: #{tpu_custom_call.1} parent=47 // pred_region
          %s284 = smul.u32 8, %s18
          %p285 = scmp.lt.s32.totalorder %s284, 15
          %s286 = scalar_select %p285, %s284, 15
          %s287 = smul.addr %s286, 2
          %s288 = smul.addr %s287, 8
          %s289 = scalar_lea.vmem %s0, %s288
          %s290 = smul.u32 8, %s18
        $region52: #{tpu_custom_call.1} parent=47 // pred_fallthru
          _
      $region48: #{tpu_custom_call.1} parent=5 // pred_fallthru
        _
      %p291 = scmp.le.s32.totalorder 1, %s18
      %p292 = scmp.lt.s32.totalorder %s18, 3
      %p293 = pnand %p291, %p292
      %p294 = pneg %p293
      // Predicated region
      $region53: #{tpu_custom_call.1} parent=5 // pred_check
        _
      $region54: #{tpu_custom_call.1} parent=5 // pred_check_branch
        %296 = sbr.rel (%p293) target = $region56
      $region55: #{tpu_custom_call.1} parent=5 // pred_region
        %s297 = ssub.s32 %s18, 1
        %s298 = smul.u32 8, %s23
        %p299 = scmp.lt.s32.totalorder %s298, 15
        %s300 = scalar_select %p299, %s298, 15
        %s301 = smul.addr %s300, 2
        %s302 = smul.addr %s301, 8
        %s303 = scalar_lea.vmem %s0, %s302
        %p304 = pneg %p44
        %p305 = pneg %p41
        %p306 = pneg %p65
        %p307 = pneg %p62
        %p308 = pneg %p86
        %p309 = pneg %p83
        %p310 = pneg %p107
        %p311 = pneg %p104
        %p312 = pneg %p128
        %p313 = pneg %p125
        %p314 = pneg %p149
        %p315 = pneg %p146
        %p316 = pneg %p170
        %p317 = pneg %p167
        %p318 = pneg %p191
        %p319 = pneg %p188
        %p320 = pneg %p212
        %p321 = pneg %p209
        %p322 = pneg %p238
        %p323 = pneg %p235
        %s324 = sand.u32 %s225, 1
        %s325 = scalar_lea.sflag [#allocation3], %s324
        %s326 = sand.u32 %s225, 1
        %s327 = smul.addr %s326, 8
        %s328 = scalar_lea.vmem [#allocation2], %s327
        %s329 = smul.u32 8, %s23
        %p330 = scmp.lt.s32.totalorder %s329, 15
        %s331 = scalar_select %p330, %s329, 15
        %s332 = smul.addr %s331, 2
        %s333 = smul.addr %s332, 8
        %s334 = scalar_lea.vmem %s0, %s333
        %s335 = smul.u32 8, %s23
        %v336 = vld [vmem:[%s1] sm:$0xf]
        %v337 = vld [vmem:[%s1 + $0x4] sm:$0xf]
        %v338 = vld [vmem:[%s1 + $0x8] sm:$0xf]
        %v339 = vld [vmem:[%s1 + $0xc] sm:$0xf]
        %v340 = vld [vmem:[%s1 + $0x10] sm:$0xf]
        %v341 = vld [vmem:[%s1 + $0x14] sm:$0xf]
        %v342 = vld [vmem:[%s1 + $0x18] sm:$0xf]
        %v343 = vld [vmem:[%s1 + $0x1c] sm:$0xf]
        %v344 = vld [vmem:[%s1 + $0x20] sm:$0xf]
        %v345 = vld [vmem:[%s1 + $0x24] sm:$0xf]
        %v346 = vld [vmem:[%s1 + $0x28] sm:$0xf]
        %v347 = vld [vmem:[%s1 + $0x2c] sm:$0xf]
        %v348 = vld [vmem:[%s1 + $0x30] sm:$0xf]
        %v349 = vld [vmem:[%s1 + $0x34] sm:$0xf]
        %v350 = vld [vmem:[%s1 + $0x38] sm:$0xf]
        %v351 = vld [vmem:[%s1 + $0x3c] sm:$0xf]
        %v352 = vld [vmem:[%s3] sm:$0xf]
        %v353 = vld [vmem:[%s3 + $0x4] sm:$0xf]
        %v354 = vld [vmem:[%s3 + $0x8] sm:$0xf]
        %v355 = vld [vmem:[%s3 + $0xc] sm:$0xf]
        %v356 = vld [vmem:[%s3 + $0x10] sm:$0xf]
        %v357 = vld [vmem:[%s3 + $0x14] sm:$0xf]
        %v358 = vld [vmem:[%s3 + $0x18] sm:$0xf]
        %v359 = vld [vmem:[%s3 + $0x1c] sm:$0xf]
        %v360 = vld [vmem:[%s3 + $0x20] sm:$0xf]
        %v361 = vld [vmem:[%s3 + $0x24] sm:$0xf]
        %v362 = vld [vmem:[%s3 + $0x28] sm:$0xf]
        %v363 = vld [vmem:[%s3 + $0x2c] sm:$0xf]
        %v364 = vld [vmem:[%s3 + $0x30] sm:$0xf]
        %v365 = vld [vmem:[%s3 + $0x34] sm:$0xf]
        %v366 = vld [vmem:[%s3 + $0x38] sm:$0xf]
        %v367 = vld [vmem:[%s3 + $0x3c] sm:$0xf]
        %v368 = vld [vmem:[%s5] sm:$0xf]
        %v369 = vld [vmem:[%s5 + $0x4] sm:$0xf]
        %v370 = vld [vmem:[%s5 + $0x8] sm:$0xf]
        %v371 = vld [vmem:[%s5 + $0xc] sm:$0xf]
        %v372 = vld [vmem:[%s5 + $0x10] sm:$0xf]
        %v373 = vld [vmem:[%s5 + $0x14] sm:$0xf]
        %v374 = vld [vmem:[%s5 + $0x18] sm:$0xf]
        %v375 = vld [vmem:[%s5 + $0x1c] sm:$0xf]
        %v376 = vld [vmem:[%s5 + $0x20] sm:$0xf]
        %v377 = vld [vmem:[%s5 + $0x24] sm:$0xf]
        %v378 = vld [vmem:[%s5 + $0x28] sm:$0xf]
        %v379 = vld [vmem:[%s5 + $0x2c] sm:$0xf]
        %v380 = vld [vmem:[%s5 + $0x30] sm:$0xf]
        %v381 = vld [vmem:[%s5 + $0x34] sm:$0xf]
        %v382 = vld [vmem:[%s5 + $0x38] sm:$0xf]
        %v383 = vld [vmem:[%s5 + $0x3c] sm:$0xf]
        %v384 = vld [vmem:[%s2] sm:$0x1]
        %v385 = vld [vmem:[%s4] sm:$0x1]
        %v386 = vld [vmem:[%s6] sm:$0x1]
        %v387 = vld [vmem:[%s334] sm:$0x1]
        %v388 = vld [vmem:[%s334 + $0x10] sm:$0x1]
        %v389 = vld [vmem:[%s334 + $0x20] sm:$0x1]
        %v390 = vld [vmem:[%s334 + $0x30] sm:$0x1]
        %v391 = vld [vmem:[%s334 + $0x40] sm:$0x1]
        %v392 = vld [vmem:[%s334 + $0x50] sm:$0x1]
        %v393 = vld [vmem:[%s334 + $0x60] sm:$0x1]
        %v394 = vld [vmem:[%s334 + $0x70] sm:$0x1]
        %v395 = vpack.c.bf16 %v387, %v387
        %v396 = vpack.c.bf16 %v388, %v388
        %v397 = vpack.c.bf16 %v389, %v389
        %v398 = vpack.c.bf16 %v390, %v390
        %v399 = vpack.c.bf16 %v391, %v391
        %v400 = vpack.c.bf16 %v392, %v392
        %v401 = vpack.c.bf16 %v393, %v393
        %v402 = vpack.c.bf16 %v394, %v394
        %v404 = vperm.slane %v384, 0
        %v414 = vunpack.c.l.b16 %v395
        %v415 = vunpack.c.l.b16 %v396
        %v416 = vunpack.c.l.b16 %v397
        %v417 = vunpack.c.l.b16 %v398
        %v418 = vunpack.c.l.b16 %v399
        %v419 = vunpack.c.l.b16 %v400
        %v420 = vunpack.c.l.b16 %v401
        %v421 = vunpack.c.l.b16 %v402
        %v422 = vrot.slane %v415, 7
        %vm423 = vcmask 1041409
        %v424 = vsel %vm423, %v422, %v414
        %v425 = vrot.slane %v416, 6
        %vm426 = vcmask 1042434
        %v427 = vsel %vm426, %v425, %v424
        %v428 = vrot.slane %v417, 5
        %vm429 = vcmask 1043459
        %v430 = vsel %vm429, %v428, %v427
        %v431 = vrot.slane %v418, 4
        %vm432 = vcmask 1044484
        %v433 = vsel %vm432, %v431, %v430
        %v434 = vrot.slane %v419, 3
        %vm435 = vcmask 1045509
        %v436 = vsel %vm435, %v434, %v433
        %v437 = vrot.slane %v420, 2
        %vm438 = vcmask 1046534
        %v439 = vsel %vm438, %v437, %v436
        %v440 = vrot.slane %v421, 1
        %vm441 = vcmask 1047559
        %v442 = vsel %vm441, %v440, %v439
        %v443 = vpack.c.b16 %v442, %v442
        %v461 = vunpack.c.l.b16 %v336
        %v462 = vunpack.c.l.b16 %v337
        %v463 = vunpack.c.l.b16 %v338
        %v464 = vunpack.c.l.b16 %v339
        %v465 = vunpack.c.l.b16 %v340
        %v466 = vunpack.c.l.b16 %v341
        %v467 = vunpack.c.l.b16 %v342
        %v468 = vunpack.c.l.b16 %v343
        %v469 = vunpack.c.l.b16 %v344
        %v470 = vunpack.c.l.b16 %v345
        %v471 = vunpack.c.l.b16 %v346
        %v472 = vunpack.c.l.b16 %v347
        %v473 = vunpack.c.l.b16 %v348
        %v474 = vunpack.c.l.b16 %v349
        %v475 = vunpack.c.l.b16 %v350
        %v476 = vunpack.c.l.b16 %v351
        %v477 = vpack.c.b16 %v462, %v461
        %v478 = vpack.c.b16 %v464, %v463
        %v479 = vpack.c.b16 %v466, %v465
        %v480 = vpack.c.b16 %v468, %v467
        %v481 = vpack.c.b16 %v470, %v469
        %v482 = vpack.c.b16 %v472, %v471
        %v483 = vpack.c.b16 %v474, %v473
        %v484 = vpack.c.b16 %v476, %v475
        %493 = vmatpush.bf16.msra.mxu0 %v484
        %494 = vmatpush.bf16.msra.mxu0 %v483
        %495 = vmatpush.bf16.msra.mxu0 %v482
        %496 = vmatpush.bf16.msra.mxu0 %v481
        %497 = vmatpush.bf16.msra.mxu0 %v480
        %498 = vmatpush.bf16.msra.mxu0 %v479
        %499 = vmatpush.bf16.msra.mxu0 %v478
        %500 = vmatpush.bf16.msra.mxu0 %v477
        %501 = vmatmul.bf16.gmra.mxu0 %v443
        %v502 = vpop.f32.mrf.mxu0
        %v503 = vadd.f32 %v404, %v502
        %v504 = vpop.f32.mrf.mxu0
        %505 = vdwg.mxu0
        %vm506 = vcmp.gt.f32.partialorder %v503, 0.0
        %v507 = vmul.f32 %v503, 0.01
        %v508 = vsel %vm506, %v503, %v507
        %v509 = vpack.c.bf16 %v508, %v508
        %v511 = vperm.slane %v385, 0
        %v529 = vunpack.c.l.b16 %v352
        %v530 = vunpack.c.l.b16 %v353
        %v531 = vunpack.c.l.b16 %v354
        %v532 = vunpack.c.l.b16 %v355
        %v533 = vunpack.c.l.b16 %v356
        %v534 = vunpack.c.l.b16 %v357
        %v535 = vunpack.c.l.b16 %v358
        %v536 = vunpack.c.l.b16 %v359
        %v537 = vunpack.c.l.b16 %v360
        %v538 = vunpack.c.l.b16 %v361
        %v539 = vunpack.c.l.b16 %v362
        %v540 = vunpack.c.l.b16 %v363
        %v541 = vunpack.c.l.b16 %v364
        %v542 = vunpack.c.l.b16 %v365
        %v543 = vunpack.c.l.b16 %v366
        %v544 = vunpack.c.l.b16 %v367
        %v545 = vpack.c.b16 %v530, %v529
        %v546 = vpack.c.b16 %v532, %v531
        %v547 = vpack.c.b16 %v534, %v533
        %v548 = vpack.c.b16 %v536, %v535
        %v549 = vpack.c.b16 %v538, %v537
        %v550 = vpack.c.b16 %v540, %v539
        %v551 = vpack.c.b16 %v542, %v541
        %v552 = vpack.c.b16 %v544, %v543
        %561 = vmatpush.bf16.msra.mxu0 %v552
        %562 = vmatpush.bf16.msra.mxu0 %v551
        %563 = vmatpush.bf16.msra.mxu0 %v550
        %564 = vmatpush.bf16.msra.mxu0 %v549
        %565 = vmatpush.bf16.msra.mxu0 %v548
        %566 = vmatpush.bf16.msra.mxu0 %v547
        %567 = vmatpush.bf16.msra.mxu0 %v546
        %568 = vmatpush.bf16.msra.mxu0 %v545
        %569 = vmatmul.bf16.gmra.mxu0 %v509
        %v570 = vpop.f32.mrf.mxu0
        %v571 = vadd.f32 %v511, %v570
        %v572 = vpop.f32.mrf.mxu0
        %573 = vdwg.mxu0
        %vm574 = vcmp.gt.f32.partialorder %v571, 0.0
        %v575 = vmul.f32 %v571, 0.01
        %v576 = vsel %vm574, %v571, %v575
        %v577 = vpack.c.bf16 %v576, %v576
        %v579 = vperm.slane %v386, 0
        %v597 = vunpack.c.l.b16 %v368
        %v598 = vunpack.c.l.b16 %v369
        %v599 = vunpack.c.l.b16 %v370
        %v600 = vunpack.c.l.b16 %v371
        %v601 = vunpack.c.l.b16 %v372
        %v602 = vunpack.c.l.b16 %v373
        %v603 = vunpack.c.l.b16 %v374
        %v604 = vunpack.c.l.b16 %v375
        %v605 = vunpack.c.l.b16 %v376
        %v606 = vunpack.c.l.b16 %v377
        %v607 = vunpack.c.l.b16 %v378
        %v608 = vunpack.c.l.b16 %v379
        %v609 = vunpack.c.l.b16 %v380
        %v610 = vunpack.c.l.b16 %v381
        %v611 = vunpack.c.l.b16 %v382
        %v612 = vunpack.c.l.b16 %v383
        %v613 = vpack.c.b16 %v598, %v597
        %v614 = vpack.c.b16 %v600, %v599
        %v615 = vpack.c.b16 %v602, %v601
        %v616 = vpack.c.b16 %v604, %v603
        %v617 = vpack.c.b16 %v606, %v605
        %v618 = vpack.c.b16 %v608, %v607
        %v619 = vpack.c.b16 %v610, %v609
        %v620 = vpack.c.b16 %v612, %v611
        %629 = vmatpush.bf16.msra.mxu0 %v620
        %630 = vmatpush.bf16.msra.mxu0 %v619
        %631 = vmatpush.bf16.msra.mxu0 %v618
        %632 = vmatpush.bf16.msra.mxu0 %v617
        %633 = vmatpush.bf16.msra.mxu0 %v616
        %634 = vmatpush.bf16.msra.mxu0 %v615
        %635 = vmatpush.bf16.msra.mxu0 %v614
        %636 = vmatpush.bf16.msra.mxu0 %v613
        %637 = vmatmul.bf16.gmra.mxu0 %v577
        %v638 = vpop.f32.mrf.mxu0
        %v639 = vadd.f32 %v579, %v638
        %v640 = vpop.f32.mrf.mxu0
        %641 = vdwg.mxu0
        %vm642 = vcmp.gt.f32.partialorder %v639, 0.0
        %v643 = vmul.f32 %v639, 0.01
        %v644 = vsel %vm642, %v639, %v643
        %v645 = vadd.f32 %v644, 0.0
        %v654 = vrot.slane %v388, 7
        %v655 = vsel %vm423, %v654, %v387
        %v656 = vrot.slane %v389, 6
        %v657 = vsel %vm426, %v656, %v655
        %v658 = vrot.slane %v390, 5
        %v659 = vsel %vm429, %v658, %v657
        %v660 = vrot.slane %v391, 4
        %v661 = vsel %vm432, %v660, %v659
        %v662 = vrot.slane %v392, 3
        %v663 = vsel %vm435, %v662, %v661
        %v664 = vrot.slane %v393, 2
        %v665 = vsel %vm438, %v664, %v663
        %v666 = vrot.slane %v394, 1
        %v667 = vsel %vm441, %v666, %v665
        %v669 = vadd.f32 %v645, %v667
        %v670 = vld [vmem:[%s334 + $0x1] sm:$0x1]
        %v671 = vld [vmem:[%s334 + $0x11] sm:$0x1]
        %v672 = vld [vmem:[%s334 + $0x21] sm:$0x1]
        %v673 = vld [vmem:[%s334 + $0x31] sm:$0x1]
        %v674 = vld [vmem:[%s334 + $0x41] sm:$0x1]
        %v675 = vld [vmem:[%s334 + $0x51] sm:$0x1]
        %v676 = vld [vmem:[%s334 + $0x61] sm:$0x1]
        %v677 = vld [vmem:[%s334 + $0x71] sm:$0x1]
        %v678 = vpack.c.bf16 %v670, %v670
        %v679 = vpack.c.bf16 %v671, %v671
        %v680 = vpack.c.bf16 %v672, %v672
        %v681 = vpack.c.bf16 %v673, %v673
        %v682 = vpack.c.bf16 %v674, %v674
        %v683 = vpack.c.bf16 %v675, %v675
        %v684 = vpack.c.bf16 %v676, %v676
        %v685 = vpack.c.bf16 %v677, %v677
        %v694 = vunpack.c.l.b16 %v678
        %v695 = vunpack.c.l.b16 %v679
        %v696 = vunpack.c.l.b16 %v680
        %v697 = vunpack.c.l.b16 %v681
        %v698 = vunpack.c.l.b16 %v682
        %v699 = vunpack.c.l.b16 %v683
        %v700 = vunpack.c.l.b16 %v684
        %v701 = vunpack.c.l.b16 %v685
        %v702 = vrot.slane %v695, 7
        %v703 = vsel %vm423, %v702, %v694
        %v704 = vrot.slane %v696, 6
        %v705 = vsel %vm426, %v704, %v703
        %v706 = vrot.slane %v697, 5
        %v707 = vsel %vm429, %v706, %v705
        %v708 = vrot.slane %v698, 4
        %v709 = vsel %vm432, %v708, %v707
        %v710 = vrot.slane %v699, 3
        %v711 = vsel %vm435, %v710, %v709
        %v712 = vrot.slane %v700, 2
        %v713 = vsel %vm438, %v712, %v711
        %v714 = vrot.slane %v701, 1
        %v715 = vsel %vm441, %v714, %v713
        %v716 = vpack.c.b16 %v715, %v715
        %718 = vmatpush.bf16.msra.mxu0 %v484
        %719 = vmatpush.bf16.msra.mxu0 %v483
        %720 = vmatpush.bf16.msra.mxu0 %v482
        %721 = vmatpush.bf16.msra.mxu0 %v481
        %722 = vmatpush.bf16.msra.mxu0 %v480
        %723 = vmatpush.bf16.msra.mxu0 %v479
        %724 = vmatpush.bf16.msra.mxu0 %v478
        %725 = vmatpush.bf16.msra.mxu0 %v477
        %726 = vmatmul.bf16.gmra.mxu0 %v716
        %v727 = vpop.f32.mrf.mxu0
        %v728 = vadd.f32 %v404, %v727
        %v729 = vpop.f32.mrf.mxu0
        %730 = vdwg.mxu0
        %vm731 = vcmp.gt.f32.partialorder %v728, 0.0
        %v732 = vmul.f32 %v728, 0.01
        %v733 = vsel %vm731, %v728, %v732
        %v734 = vpack.c.bf16 %v733, %v733
        %735 = vmatpush.bf16.msra.mxu0 %v552
        %736 = vmatpush.bf16.msra.mxu0 %v551
        %737 = vmatpush.bf16.msra.mxu0 %v550
        %738 = vmatpush.bf16.msra.mxu0 %v549
        %739 = vmatpush.bf16.msra.mxu0 %v548
        %740 = vmatpush.bf16.msra.mxu0 %v547
        %741 = vmatpush.bf16.msra.mxu0 %v546
        %742 = vmatpush.bf16.msra.mxu0 %v545
        %743 = vmatmul.bf16.gmra.mxu0 %v734
        %v744 = vpop.f32.mrf.mxu0
        %v745 = vadd.f32 %v511, %v744
        %v746 = vpop.f32.mrf.mxu0
        %747 = vdwg.mxu0
        %vm748 = vcmp.gt.f32.partialorder %v745, 0.0
        %v749 = vmul.f32 %v745, 0.01
        %v750 = vsel %vm748, %v745, %v749
        %v751 = vpack.c.bf16 %v750, %v750
        %752 = vmatpush.bf16.msra.mxu0 %v620
        %753 = vmatpush.bf16.msra.mxu0 %v619
        %754 = vmatpush.bf16.msra.mxu0 %v618
        %755 = vmatpush.bf16.msra.mxu0 %v617
        %756 = vmatpush.bf16.msra.mxu0 %v616
        %757 = vmatpush.bf16.msra.mxu0 %v615
        %758 = vmatpush.bf16.msra.mxu0 %v614
        %759 = vmatpush.bf16.msra.mxu0 %v613
        %760 = vmatmul.bf16.gmra.mxu0 %v751
        %v761 = vpop.f32.mrf.mxu0
        %v762 = vadd.f32 %v579, %v761
        %v763 = vpop.f32.mrf.mxu0
        %764 = vdwg.mxu0
        %vm765 = vcmp.gt.f32.partialorder %v762, 0.0
        %v766 = vmul.f32 %v762, 0.01
        %v767 = vsel %vm765, %v762, %v766
        %v768 = vadd.f32 %v669, %v767
        %v777 = vrot.slane %v671, 7
        %v778 = vsel %vm423, %v777, %v670
        %v779 = vrot.slane %v672, 6
        %v780 = vsel %vm426, %v779, %v778
        %v781 = vrot.slane %v673, 5
        %v782 = vsel %vm429, %v781, %v780
        %v783 = vrot.slane %v674, 4
        %v784 = vsel %vm432, %v783, %v782
        %v785 = vrot.slane %v675, 3
        %v786 = vsel %vm435, %v785, %v784
        %v787 = vrot.slane %v676, 2
        %v788 = vsel %vm438, %v787, %v786
        %v789 = vrot.slane %v677, 1
        %v790 = vsel %vm441, %v789, %v788
        %v792 = vadd.f32 %v768, %v790
        %v793 = vld [vmem:[%s334 + $0x2] sm:$0x1]
        %v794 = vld [vmem:[%s334 + $0x12] sm:$0x1]
        %v795 = vld [vmem:[%s334 + $0x22] sm:$0x1]
        %v796 = vld [vmem:[%s334 + $0x32] sm:$0x1]
        %v797 = vld [vmem:[%s334 + $0x42] sm:$0x1]
        %v798 = vld [vmem:[%s334 + $0x52] sm:$0x1]
        %v799 = vld [vmem:[%s334 + $0x62] sm:$0x1]
        %v800 = vld [vmem:[%s334 + $0x72] sm:$0x1]
        %v801 = vpack.c.bf16 %v793, %v793
        %v802 = vpack.c.bf16 %v794, %v794
        %v803 = vpack.c.bf16 %v795, %v795
        %v804 = vpack.c.bf16 %v796, %v796
        %v805 = vpack.c.bf16 %v797, %v797
        %v806 = vpack.c.bf16 %v798, %v798
        %v807 = vpack.c.bf16 %v799, %v799
        %v808 = vpack.c.bf16 %v800, %v800
        %v817 = vunpack.c.l.b16 %v801
        %v818 = vunpack.c.l.b16 %v802
        %v819 = vunpack.c.l.b16 %v803
        %v820 = vunpack.c.l.b16 %v804
        %v821 = vunpack.c.l.b16 %v805
        %v822 = vunpack.c.l.b16 %v806
        %v823 = vunpack.c.l.b16 %v807
        %v824 = vunpack.c.l.b16 %v808
        %v825 = vrot.slane %v818, 7
        %v826 = vsel %vm423, %v825, %v817
        %v827 = vrot.slane %v819, 6
        %v828 = vsel %vm426, %v827, %v826
        %v829 = vrot.slane %v820, 5
        %v830 = vsel %vm429, %v829, %v828
        %v831 = vrot.slane %v821, 4
        %v832 = vsel %vm432, %v831, %v830
        %v833 = vrot.slane %v822, 3
        %v834 = vsel %vm435, %v833, %v832
        %v835 = vrot.slane %v823, 2
        %v836 = vsel %vm438, %v835, %v834
        %v837 = vrot.slane %v824, 1
        %v838 = vsel %vm441, %v837, %v836
        %v839 = vpack.c.b16 %v838, %v838
        %841 = vmatpush.bf16.msra.mxu0 %v484
        %842 = vmatpush.bf16.msra.mxu0 %v483
        %843 = vmatpush.bf16.msra.mxu0 %v482
        %844 = vmatpush.bf16.msra.mxu0 %v481
        %845 = vmatpush.bf16.msra.mxu0 %v480
        %846 = vmatpush.bf16.msra.mxu0 %v479
        %847 = vmatpush.bf16.msra.mxu0 %v478
        %848 = vmatpush.bf16.msra.mxu0 %v477
        %849 = vmatmul.bf16.gmra.mxu0 %v839
        %v850 = vpop.f32.mrf.mxu0
        %v851 = vadd.f32 %v404, %v850
        %v852 = vpop.f32.mrf.mxu0
        %853 = vdwg.mxu0
        %vm854 = vcmp.gt.f32.partialorder %v851, 0.0
        %v855 = vmul.f32 %v851, 0.01
        %v856 = vsel %vm854, %v851, %v855
        %v857 = vpack.c.bf16 %v856, %v856
        %858 = vmatpush.bf16.msra.mxu0 %v552
        %859 = vmatpush.bf16.msra.mxu0 %v551
        %860 = vmatpush.bf16.msra.mxu0 %v550
        %861 = vmatpush.bf16.msra.mxu0 %v549
        %862 = vmatpush.bf16.msra.mxu0 %v548
        %863 = vmatpush.bf16.msra.mxu0 %v547
        %864 = vmatpush.bf16.msra.mxu0 %v546
        %865 = vmatpush.bf16.msra.mxu0 %v545
        %866 = vmatmul.bf16.gmra.mxu0 %v857
        %v867 = vpop.f32.mrf.mxu0
        %v868 = vadd.f32 %v511, %v867
        %v869 = vpop.f32.mrf.mxu0
        %870 = vdwg.mxu0
        %vm871 = vcmp.gt.f32.partialorder %v868, 0.0
        %v872 = vmul.f32 %v868, 0.01
        %v873 = vsel %vm871, %v868, %v872
        %v874 = vpack.c.bf16 %v873, %v873
        %875 = vmatpush.bf16.msra.mxu0 %v620
        %876 = vmatpush.bf16.msra.mxu0 %v619
        %877 = vmatpush.bf16.msra.mxu0 %v618
        %878 = vmatpush.bf16.msra.mxu0 %v617
        %879 = vmatpush.bf16.msra.mxu0 %v616
        %880 = vmatpush.bf16.msra.mxu0 %v615
        %881 = vmatpush.bf16.msra.mxu0 %v614
        %882 = vmatpush.bf16.msra.mxu0 %v613
        %883 = vmatmul.bf16.gmra.mxu0 %v874
        %v884 = vpop.f32.mrf.mxu0
        %v885 = vadd.f32 %v579, %v884
        %v886 = vpop.f32.mrf.mxu0
        %887 = vdwg.mxu0
        %vm888 = vcmp.gt.f32.partialorder %v885, 0.0
        %v889 = vmul.f32 %v885, 0.01
        %v890 = vsel %vm888, %v885, %v889
        %v891 = vadd.f32 %v792, %v890
        %v900 = vrot.slane %v794, 7
        %v901 = vsel %vm423, %v900, %v793
        %v902 = vrot.slane %v795, 6
        %v903 = vsel %vm426, %v902, %v901
        %v904 = vrot.slane %v796, 5
        %v905 = vsel %vm429, %v904, %v903
        %v906 = vrot.slane %v797, 4
        %v907 = vsel %vm432, %v906, %v905
        %v908 = vrot.slane %v798, 3
        %v909 = vsel %vm435, %v908, %v907
        %v910 = vrot.slane %v799, 2
        %v911 = vsel %vm438, %v910, %v909
        %v912 = vrot.slane %v800, 1
        %v913 = vsel %vm441, %v912, %v911
        %v915 = vadd.f32 %v891, %v913
        %v916 = vld [vmem:[%s334 + $0x3] sm:$0x1]
        %v917 = vld [vmem:[%s334 + $0x13] sm:$0x1]
        %v918 = vld [vmem:[%s334 + $0x23] sm:$0x1]
        %v919 = vld [vmem:[%s334 + $0x33] sm:$0x1]
        %v920 = vld [vmem:[%s334 + $0x43] sm:$0x1]
        %v921 = vld [vmem:[%s334 + $0x53] sm:$0x1]
        %v922 = vld [vmem:[%s334 + $0x63] sm:$0x1]
        %v923 = vld [vmem:[%s334 + $0x73] sm:$0x1]
        %v924 = vpack.c.bf16 %v916, %v916
        %v925 = vpack.c.bf16 %v917, %v917
        %v926 = vpack.c.bf16 %v918, %v918
        %v927 = vpack.c.bf16 %v919, %v919
        %v928 = vpack.c.bf16 %v920, %v920
        %v929 = vpack.c.bf16 %v921, %v921
        %v930 = vpack.c.bf16 %v922, %v922
        %v931 = vpack.c.bf16 %v923, %v923
        %v940 = vunpack.c.l.b16 %v924
        %v941 = vunpack.c.l.b16 %v925
        %v942 = vunpack.c.l.b16 %v926
        %v943 = vunpack.c.l.b16 %v927
        %v944 = vunpack.c.l.b16 %v928
        %v945 = vunpack.c.l.b16 %v929
        %v946 = vunpack.c.l.b16 %v930
        %v947 = vunpack.c.l.b16 %v931
        %v948 = vrot.slane %v941, 7
        %v949 = vsel %vm423, %v948, %v940
        %v950 = vrot.slane %v942, 6
        %v951 = vsel %vm426, %v950, %v949
        %v952 = vrot.slane %v943, 5
        %v953 = vsel %vm429, %v952, %v951
        %v954 = vrot.slane %v944, 4
        %v955 = vsel %vm432, %v954, %v953
        %v956 = vrot.slane %v945, 3
        %v957 = vsel %vm435, %v956, %v955
        %v958 = vrot.slane %v946, 2
        %v959 = vsel %vm438, %v958, %v957
        %v960 = vrot.slane %v947, 1
        %v961 = vsel %vm441, %v960, %v959
        %v962 = vpack.c.b16 %v961, %v961
        %964 = vmatpush.bf16.msra.mxu0 %v484
        %965 = vmatpush.bf16.msra.mxu0 %v483
        %966 = vmatpush.bf16.msra.mxu0 %v482
        %967 = vmatpush.bf16.msra.mxu0 %v481
        %968 = vmatpush.bf16.msra.mxu0 %v480
        %969 = vmatpush.bf16.msra.mxu0 %v479
        %970 = vmatpush.bf16.msra.mxu0 %v478
        %971 = vmatpush.bf16.msra.mxu0 %v477
        %972 = vmatmul.bf16.gmra.mxu0 %v962
        %v973 = vpop.f32.mrf.mxu0
        %v974 = vadd.f32 %v404, %v973
        %v975 = vpop.f32.mrf.mxu0
        %976 = vdwg.mxu0
        %vm977 = vcmp.gt.f32.partialorder %v974, 0.0
        %v978 = vmul.f32 %v974, 0.01
        %v979 = vsel %vm977, %v974, %v978
        %v980 = vpack.c.bf16 %v979, %v979
        %981 = vmatpush.bf16.msra.mxu0 %v552
        %982 = vmatpush.bf16.msra.mxu0 %v551
        %983 = vmatpush.bf16.msra.mxu0 %v550
        %984 = vmatpush.bf16.msra.mxu0 %v549
        %985 = vmatpush.bf16.msra.mxu0 %v548
        %986 = vmatpush.bf16.msra.mxu0 %v547
        %987 = vmatpush.bf16.msra.mxu0 %v546
        %988 = vmatpush.bf16.msra.mxu0 %v545
        %989 = vmatmul.bf16.gmra.mxu0 %v980
        %v990 = vpop.f32.mrf.mxu0
        %v991 = vadd.f32 %v511, %v990
        %v992 = vpop.f32.mrf.mxu0
        %993 = vdwg.mxu0
        %vm994 = vcmp.gt.f32.partialorder %v991, 0.0
        %v995 = vmul.f32 %v991, 0.01
        %v996 = vsel %vm994, %v991, %v995
        %v997 = vpack.c.bf16 %v996, %v996
        %998 = vmatpush.bf16.msra.mxu0 %v620
        %999 = vmatpush.bf16.msra.mxu0 %v619
        %1000 = vmatpush.bf16.msra.mxu0 %v618
        %1001 = vmatpush.bf16.msra.mxu0 %v617
        %1002 = vmatpush.bf16.msra.mxu0 %v616
        %1003 = vmatpush.bf16.msra.mxu0 %v615
        %1004 = vmatpush.bf16.msra.mxu0 %v614
        %1005 = vmatpush.bf16.msra.mxu0 %v613
        %1006 = vmatmul.bf16.gmra.mxu0 %v997
        %v1007 = vpop.f32.mrf.mxu0
        %v1008 = vadd.f32 %v579, %v1007
        %v1009 = vpop.f32.mrf.mxu0
        %1010 = vdwg.mxu0
        %vm1011 = vcmp.gt.f32.partialorder %v1008, 0.0
        %v1012 = vmul.f32 %v1008, 0.01
        %v1013 = vsel %vm1011, %v1008, %v1012
        %v1014 = vadd.f32 %v915, %v1013
        %v1023 = vrot.slane %v917, 7
        %v1024 = vsel %vm423, %v1023, %v916
        %v1025 = vrot.slane %v918, 6
        %v1026 = vsel %vm426, %v1025, %v1024
        %v1027 = vrot.slane %v919, 5
        %v1028 = vsel %vm429, %v1027, %v1026
        %v1029 = vrot.slane %v920, 4
        %v1030 = vsel %vm432, %v1029, %v1028
        %v1031 = vrot.slane %v921, 3
        %v1032 = vsel %vm435, %v1031, %v1030
        %v1033 = vrot.slane %v922, 2
        %v1034 = vsel %vm438, %v1033, %v1032
        %v1035 = vrot.slane %v923, 1
        %v1036 = vsel %vm441, %v1035, %v1034
        %v1038 = vadd.f32 %v1014, %v1036
        %v1039 = vld [vmem:[%s334 + $0x4] sm:$0x1]
        %v1040 = vld [vmem:[%s334 + $0x14] sm:$0x1]
        %v1041 = vld [vmem:[%s334 + $0x24] sm:$0x1]
        %v1042 = vld [vmem:[%s334 + $0x34] sm:$0x1]
        %v1043 = vld [vmem:[%s334 + $0x44] sm:$0x1]
        %v1044 = vld [vmem:[%s334 + $0x54] sm:$0x1]
        %v1045 = vld [vmem:[%s334 + $0x64] sm:$0x1]
        %v1046 = vld [vmem:[%s334 + $0x74] sm:$0x1]
        %v1047 = vpack.c.bf16 %v1039, %v1039
        %v1048 = vpack.c.bf16 %v1040, %v1040
        %v1049 = vpack.c.bf16 %v1041, %v1041
        %v1050 = vpack.c.bf16 %v1042, %v1042
        %v1051 = vpack.c.bf16 %v1043, %v1043
        %v1052 = vpack.c.bf16 %v1044, %v1044
        %v1053 = vpack.c.bf16 %v1045, %v1045
        %v1054 = vpack.c.bf16 %v1046, %v1046
        %v1063 = vunpack.c.l.b16 %v1047
        %v1064 = vunpack.c.l.b16 %v1048
        %v1065 = vunpack.c.l.b16 %v1049
        %v1066 = vunpack.c.l.b16 %v1050
        %v1067 = vunpack.c.l.b16 %v1051
        %v1068 = vunpack.c.l.b16 %v1052
        %v1069 = vunpack.c.l.b16 %v1053
        %v1070 = vunpack.c.l.b16 %v1054
        %v1071 = vrot.slane %v1064, 7
        %v1072 = vsel %vm423, %v1071, %v1063
        %v1073 = vrot.slane %v1065, 6
        %v1074 = vsel %vm426, %v1073, %v1072
        %v1075 = vrot.slane %v1066, 5
        %v1076 = vsel %vm429, %v1075, %v1074
        %v1077 = vrot.slane %v1067, 4
        %v1078 = vsel %vm432, %v1077, %v1076
        %v1079 = vrot.slane %v1068, 3
        %v1080 = vsel %vm435, %v1079, %v1078
        %v1081 = vrot.slane %v1069, 2
        %v1082 = vsel %vm438, %v1081, %v1080
        %v1083 = vrot.slane %v1070, 1
        %v1084 = vsel %vm441, %v1083, %v1082
        %v1085 = vpack.c.b16 %v1084, %v1084
        %1087 = vmatpush.bf16.msra.mxu0 %v484
        %1088 = vmatpush.bf16.msra.mxu0 %v483
        %1089 = vmatpush.bf16.msra.mxu0 %v482
        %1090 = vmatpush.bf16.msra.mxu0 %v481
        %1091 = vmatpush.bf16.msra.mxu0 %v480
        %1092 = vmatpush.bf16.msra.mxu0 %v479
        %1093 = vmatpush.bf16.msra.mxu0 %v478
        %1094 = vmatpush.bf16.msra.mxu0 %v477
        %1095 = vmatmul.bf16.gmra.mxu0 %v1085
        %v1096 = vpop.f32.mrf.mxu0
        %v1097 = vadd.f32 %v404, %v1096
        %v1098 = vpop.f32.mrf.mxu0
        %1099 = vdwg.mxu0
        %vm1100 = vcmp.gt.f32.partialorder %v1097, 0.0
        %v1101 = vmul.f32 %v1097, 0.01
        %v1102 = vsel %vm1100, %v1097, %v1101
        %v1103 = vpack.c.bf16 %v1102, %v1102
        %1104 = vmatpush.bf16.msra.mxu0 %v552
        %1105 = vmatpush.bf16.msra.mxu0 %v551
        %1106 = vmatpush.bf16.msra.mxu0 %v550
        %1107 = vmatpush.bf16.msra.mxu0 %v549
        %1108 = vmatpush.bf16.msra.mxu0 %v548
        %1109 = vmatpush.bf16.msra.mxu0 %v547
        %1110 = vmatpush.bf16.msra.mxu0 %v546
        %1111 = vmatpush.bf16.msra.mxu0 %v545
        %1112 = vmatmul.bf16.gmra.mxu0 %v1103
        %v1113 = vpop.f32.mrf.mxu0
        %v1114 = vadd.f32 %v511, %v1113
        %v1115 = vpop.f32.mrf.mxu0
        %1116 = vdwg.mxu0
        %vm1117 = vcmp.gt.f32.partialorder %v1114, 0.0
        %v1118 = vmul.f32 %v1114, 0.01
        %v1119 = vsel %vm1117, %v1114, %v1118
        %v1120 = vpack.c.bf16 %v1119, %v1119
        %1121 = vmatpush.bf16.msra.mxu0 %v620
        %1122 = vmatpush.bf16.msra.mxu0 %v619
        %1123 = vmatpush.bf16.msra.mxu0 %v618
        %1124 = vmatpush.bf16.msra.mxu0 %v617
        %1125 = vmatpush.bf16.msra.mxu0 %v616
        %1126 = vmatpush.bf16.msra.mxu0 %v615
        %1127 = vmatpush.bf16.msra.mxu0 %v614
        %1128 = vmatpush.bf16.msra.mxu0 %v613
        %1129 = vmatmul.bf16.gmra.mxu0 %v1120
        %v1130 = vpop.f32.mrf.mxu0
        %v1131 = vadd.f32 %v579, %v1130
        %v1132 = vpop.f32.mrf.mxu0
        %1133 = vdwg.mxu0
        %vm1134 = vcmp.gt.f32.partialorder %v1131, 0.0
        %v1135 = vmul.f32 %v1131, 0.01
        %v1136 = vsel %vm1134, %v1131, %v1135
        %v1137 = vadd.f32 %v1038, %v1136
        %v1146 = vrot.slane %v1040, 7
        %v1147 = vsel %vm423, %v1146, %v1039
        %v1148 = vrot.slane %v1041, 6
        %v1149 = vsel %vm426, %v1148, %v1147
        %v1150 = vrot.slane %v1042, 5
        %v1151 = vsel %vm429, %v1150, %v1149
        %v1152 = vrot.slane %v1043, 4
        %v1153 = vsel %vm432, %v1152, %v1151
        %v1154 = vrot.slane %v1044, 3
        %v1155 = vsel %vm435, %v1154, %v1153
        %v1156 = vrot.slane %v1045, 2
        %v1157 = vsel %vm438, %v1156, %v1155
        %v1158 = vrot.slane %v1046, 1
        %v1159 = vsel %vm441, %v1158, %v1157
        %v1161 = vadd.f32 %v1137, %v1159
        %v1162 = vld [vmem:[%s334 + $0x5] sm:$0x1]
        %v1163 = vld [vmem:[%s334 + $0x15] sm:$0x1]
        %v1164 = vld [vmem:[%s334 + $0x25] sm:$0x1]
        %v1165 = vld [vmem:[%s334 + $0x35] sm:$0x1]
        %v1166 = vld [vmem:[%s334 + $0x45] sm:$0x1]
        %v1167 = vld [vmem:[%s334 + $0x55] sm:$0x1]
        %v1168 = vld [vmem:[%s334 + $0x65] sm:$0x1]
        %v1169 = vld [vmem:[%s334 + $0x75] sm:$0x1]
        %v1170 = vpack.c.bf16 %v1162, %v1162
        %v1171 = vpack.c.bf16 %v1163, %v1163
        %v1172 = vpack.c.bf16 %v1164, %v1164
        %v1173 = vpack.c.bf16 %v1165, %v1165
        %v1174 = vpack.c.bf16 %v1166, %v1166
        %v1175 = vpack.c.bf16 %v1167, %v1167
        %v1176 = vpack.c.bf16 %v1168, %v1168
        %v1177 = vpack.c.bf16 %v1169, %v1169
        %v1186 = vunpack.c.l.b16 %v1170
        %v1187 = vunpack.c.l.b16 %v1171
        %v1188 = vunpack.c.l.b16 %v1172
        %v1189 = vunpack.c.l.b16 %v1173
        %v1190 = vunpack.c.l.b16 %v1174
        %v1191 = vunpack.c.l.b16 %v1175
        %v1192 = vunpack.c.l.b16 %v1176
        %v1193 = vunpack.c.l.b16 %v1177
        %v1194 = vrot.slane %v1187, 7
        %v1195 = vsel %vm423, %v1194, %v1186
        %v1196 = vrot.slane %v1188, 6
        %v1197 = vsel %vm426, %v1196, %v1195
        %v1198 = vrot.slane %v1189, 5
        %v1199 = vsel %vm429, %v1198, %v1197
        %v1200 = vrot.slane %v1190, 4
        %v1201 = vsel %vm432, %v1200, %v1199
        %v1202 = vrot.slane %v1191, 3
        %v1203 = vsel %vm435, %v1202, %v1201
        %v1204 = vrot.slane %v1192, 2
        %v1205 = vsel %vm438, %v1204, %v1203
        %v1206 = vrot.slane %v1193, 1
        %v1207 = vsel %vm441, %v1206, %v1205
        %v1208 = vpack.c.b16 %v1207, %v1207
        %1210 = vmatpush.bf16.msra.mxu0 %v484
        %1211 = vmatpush.bf16.msra.mxu0 %v483
        %1212 = vmatpush.bf16.msra.mxu0 %v482
        %1213 = vmatpush.bf16.msra.mxu0 %v481
        %1214 = vmatpush.bf16.msra.mxu0 %v480
        %1215 = vmatpush.bf16.msra.mxu0 %v479
        %1216 = vmatpush.bf16.msra.mxu0 %v478
        %1217 = vmatpush.bf16.msra.mxu0 %v477
        %1218 = vmatmul.bf16.gmra.mxu0 %v1208
        %v1219 = vpop.f32.mrf.mxu0
        %v1220 = vadd.f32 %v404, %v1219
        %v1221 = vpop.f32.mrf.mxu0
        %1222 = vdwg.mxu0
        %vm1223 = vcmp.gt.f32.partialorder %v1220, 0.0
        %v1224 = vmul.f32 %v1220, 0.01
        %v1225 = vsel %vm1223, %v1220, %v1224
        %v1226 = vpack.c.bf16 %v1225, %v1225
        %1227 = vmatpush.bf16.msra.mxu0 %v552
        %1228 = vmatpush.bf16.msra.mxu0 %v551
        %1229 = vmatpush.bf16.msra.mxu0 %v550
        %1230 = vmatpush.bf16.msra.mxu0 %v549
        %1231 = vmatpush.bf16.msra.mxu0 %v548
        %1232 = vmatpush.bf16.msra.mxu0 %v547
        %1233 = vmatpush.bf16.msra.mxu0 %v546
        %1234 = vmatpush.bf16.msra.mxu0 %v545
        %1235 = vmatmul.bf16.gmra.mxu0 %v1226
        %v1236 = vpop.f32.mrf.mxu0
        %v1237 = vadd.f32 %v511, %v1236
        %v1238 = vpop.f32.mrf.mxu0
        %1239 = vdwg.mxu0
        %vm1240 = vcmp.gt.f32.partialorder %v1237, 0.0
        %v1241 = vmul.f32 %v1237, 0.01
        %v1242 = vsel %vm1240, %v1237, %v1241
        %v1243 = vpack.c.bf16 %v1242, %v1242
        %1244 = vmatpush.bf16.msra.mxu0 %v620
        %1245 = vmatpush.bf16.msra.mxu0 %v619
        %1246 = vmatpush.bf16.msra.mxu0 %v618
        %1247 = vmatpush.bf16.msra.mxu0 %v617
        %1248 = vmatpush.bf16.msra.mxu0 %v616
        %1249 = vmatpush.bf16.msra.mxu0 %v615
        %1250 = vmatpush.bf16.msra.mxu0 %v614
        %1251 = vmatpush.bf16.msra.mxu0 %v613
        %1252 = vmatmul.bf16.gmra.mxu0 %v1243
        %v1253 = vpop.f32.mrf.mxu0
        %v1254 = vadd.f32 %v579, %v1253
        %v1255 = vpop.f32.mrf.mxu0
        %1256 = vdwg.mxu0
        %vm1257 = vcmp.gt.f32.partialorder %v1254, 0.0
        %v1258 = vmul.f32 %v1254, 0.01
        %v1259 = vsel %vm1257, %v1254, %v1258
        %v1260 = vadd.f32 %v1161, %v1259
        %v1269 = vrot.slane %v1163, 7
        %v1270 = vsel %vm423, %v1269, %v1162
        %v1271 = vrot.slane %v1164, 6
        %v1272 = vsel %vm426, %v1271, %v1270
        %v1273 = vrot.slane %v1165, 5
        %v1274 = vsel %vm429, %v1273, %v1272
        %v1275 = vrot.slane %v1166, 4
        %v1276 = vsel %vm432, %v1275, %v1274
        %v1277 = vrot.slane %v1167, 3
        %v1278 = vsel %vm435, %v1277, %v1276
        %v1279 = vrot.slane %v1168, 2
        %v1280 = vsel %vm438, %v1279, %v1278
        %v1281 = vrot.slane %v1169, 1
        %v1282 = vsel %vm441, %v1281, %v1280
        %v1284 = vadd.f32 %v1260, %v1282
        %v1285 = vld [vmem:[%s334 + $0x6] sm:$0x1]
        %v1286 = vld [vmem:[%s334 + $0x16] sm:$0x1]
        %v1287 = vld [vmem:[%s334 + $0x26] sm:$0x1]
        %v1288 = vld [vmem:[%s334 + $0x36] sm:$0x1]
        %v1289 = vld [vmem:[%s334 + $0x46] sm:$0x1]
        %v1290 = vld [vmem:[%s334 + $0x56] sm:$0x1]
        %v1291 = vld [vmem:[%s334 + $0x66] sm:$0x1]
        %v1292 = vld [vmem:[%s334 + $0x76] sm:$0x1]
        %v1293 = vpack.c.bf16 %v1285, %v1285
        %v1294 = vpack.c.bf16 %v1286, %v1286
        %v1295 = vpack.c.bf16 %v1287, %v1287
        %v1296 = vpack.c.bf16 %v1288, %v1288
        %v1297 = vpack.c.bf16 %v1289, %v1289
        %v1298 = vpack.c.bf16 %v1290, %v1290
        %v1299 = vpack.c.bf16 %v1291, %v1291
        %v1300 = vpack.c.bf16 %v1292, %v1292
        %v1309 = vunpack.c.l.b16 %v1293
        %v1310 = vunpack.c.l.b16 %v1294
        %v1311 = vunpack.c.l.b16 %v1295
        %v1312 = vunpack.c.l.b16 %v1296
        %v1313 = vunpack.c.l.b16 %v1297
        %v1314 = vunpack.c.l.b16 %v1298
        %v1315 = vunpack.c.l.b16 %v1299
        %v1316 = vunpack.c.l.b16 %v1300
        %v1317 = vrot.slane %v1310, 7
        %v1318 = vsel %vm423, %v1317, %v1309
        %v1319 = vrot.slane %v1311, 6
        %v1320 = vsel %vm426, %v1319, %v1318
        %v1321 = vrot.slane %v1312, 5
        %v1322 = vsel %vm429, %v1321, %v1320
        %v1323 = vrot.slane %v1313, 4
        %v1324 = vsel %vm432, %v1323, %v1322
        %v1325 = vrot.slane %v1314, 3
        %v1326 = vsel %vm435, %v1325, %v1324
        %v1327 = vrot.slane %v1315, 2
        %v1328 = vsel %vm438, %v1327, %v1326
        %v1329 = vrot.slane %v1316, 1
        %v1330 = vsel %vm441, %v1329, %v1328
        %v1331 = vpack.c.b16 %v1330, %v1330
        %1333 = vmatpush.bf16.msra.mxu0 %v484
        %1334 = vmatpush.bf16.msra.mxu0 %v483
        %1335 = vmatpush.bf16.msra.mxu0 %v482
        %1336 = vmatpush.bf16.msra.mxu0 %v481
        %1337 = vmatpush.bf16.msra.mxu0 %v480
        %1338 = vmatpush.bf16.msra.mxu0 %v479
        %1339 = vmatpush.bf16.msra.mxu0 %v478
        %1340 = vmatpush.bf16.msra.mxu0 %v477
        %1341 = vmatmul.bf16.gmra.mxu0 %v1331
        %v1342 = vpop.f32.mrf.mxu0
        %v1343 = vadd.f32 %v404, %v1342
        %v1344 = vpop.f32.mrf.mxu0
        %1345 = vdwg.mxu0
        %vm1346 = vcmp.gt.f32.partialorder %v1343, 0.0
        %v1347 = vmul.f32 %v1343, 0.01
        %v1348 = vsel %vm1346, %v1343, %v1347
        %v1349 = vpack.c.bf16 %v1348, %v1348
        %1350 = vmatpush.bf16.msra.mxu0 %v552
        %1351 = vmatpush.bf16.msra.mxu0 %v551
        %1352 = vmatpush.bf16.msra.mxu0 %v550
        %1353 = vmatpush.bf16.msra.mxu0 %v549
        %1354 = vmatpush.bf16.msra.mxu0 %v548
        %1355 = vmatpush.bf16.msra.mxu0 %v547
        %1356 = vmatpush.bf16.msra.mxu0 %v546
        %1357 = vmatpush.bf16.msra.mxu0 %v545
        %1358 = vmatmul.bf16.gmra.mxu0 %v1349
        %v1359 = vpop.f32.mrf.mxu0
        %v1360 = vadd.f32 %v511, %v1359
        %v1361 = vpop.f32.mrf.mxu0
        %1362 = vdwg.mxu0
        %vm1363 = vcmp.gt.f32.partialorder %v1360, 0.0
        %v1364 = vmul.f32 %v1360, 0.01
        %v1365 = vsel %vm1363, %v1360, %v1364
        %v1366 = vpack.c.bf16 %v1365, %v1365
        %1367 = vmatpush.bf16.msra.mxu0 %v620
        %1368 = vmatpush.bf16.msra.mxu0 %v619
        %1369 = vmatpush.bf16.msra.mxu0 %v618
        %1370 = vmatpush.bf16.msra.mxu0 %v617
        %1371 = vmatpush.bf16.msra.mxu0 %v616
        %1372 = vmatpush.bf16.msra.mxu0 %v615
        %1373 = vmatpush.bf16.msra.mxu0 %v614
        %1374 = vmatpush.bf16.msra.mxu0 %v613
        %1375 = vmatmul.bf16.gmra.mxu0 %v1366
        %v1376 = vpop.f32.mrf.mxu0
        %v1377 = vadd.f32 %v579, %v1376
        %v1378 = vpop.f32.mrf.mxu0
        %1379 = vdwg.mxu0
        %vm1380 = vcmp.gt.f32.partialorder %v1377, 0.0
        %v1381 = vmul.f32 %v1377, 0.01
        %v1382 = vsel %vm1380, %v1377, %v1381
        %v1383 = vadd.f32 %v1284, %v1382
        %v1392 = vrot.slane %v1286, 7
        %v1393 = vsel %vm423, %v1392, %v1285
        %v1394 = vrot.slane %v1287, 6
        %v1395 = vsel %vm426, %v1394, %v1393
        %v1396 = vrot.slane %v1288, 5
        %v1397 = vsel %vm429, %v1396, %v1395
        %v1398 = vrot.slane %v1289, 4
        %v1399 = vsel %vm432, %v1398, %v1397
        %v1400 = vrot.slane %v1290, 3
        %v1401 = vsel %vm435, %v1400, %v1399
        %v1402 = vrot.slane %v1291, 2
        %v1403 = vsel %vm438, %v1402, %v1401
        %v1404 = vrot.slane %v1292, 1
        %v1405 = vsel %vm441, %v1404, %v1403
        %v1407 = vadd.f32 %v1383, %v1405
        %v1408 = vld [vmem:[%s334 + $0x7] sm:$0x1]
        %v1409 = vld [vmem:[%s334 + $0x17] sm:$0x1]
        %v1410 = vld [vmem:[%s334 + $0x27] sm:$0x1]
        %v1411 = vld [vmem:[%s334 + $0x37] sm:$0x1]
        %v1412 = vld [vmem:[%s334 + $0x47] sm:$0x1]
        %v1413 = vld [vmem:[%s334 + $0x57] sm:$0x1]
        %v1414 = vld [vmem:[%s334 + $0x67] sm:$0x1]
        %v1415 = vld [vmem:[%s334 + $0x77] sm:$0x1]
        %v1416 = vpack.c.bf16 %v1408, %v1408
        %v1417 = vpack.c.bf16 %v1409, %v1409
        %v1418 = vpack.c.bf16 %v1410, %v1410
        %v1419 = vpack.c.bf16 %v1411, %v1411
        %v1420 = vpack.c.bf16 %v1412, %v1412
        %v1421 = vpack.c.bf16 %v1413, %v1413
        %v1422 = vpack.c.bf16 %v1414, %v1414
        %v1423 = vpack.c.bf16 %v1415, %v1415
        %v1432 = vunpack.c.l.b16 %v1416
        %v1433 = vunpack.c.l.b16 %v1417
        %v1434 = vunpack.c.l.b16 %v1418
        %v1435 = vunpack.c.l.b16 %v1419
        %v1436 = vunpack.c.l.b16 %v1420
        %v1437 = vunpack.c.l.b16 %v1421
        %v1438 = vunpack.c.l.b16 %v1422
        %v1439 = vunpack.c.l.b16 %v1423
        %v1440 = vrot.slane %v1433, 7
        %v1441 = vsel %vm423, %v1440, %v1432
        %v1442 = vrot.slane %v1434, 6
        %v1443 = vsel %vm426, %v1442, %v1441
        %v1444 = vrot.slane %v1435, 5
        %v1445 = vsel %vm429, %v1444, %v1443
        %v1446 = vrot.slane %v1436, 4
        %v1447 = vsel %vm432, %v1446, %v1445
        %v1448 = vrot.slane %v1437, 3
        %v1449 = vsel %vm435, %v1448, %v1447
        %v1450 = vrot.slane %v1438, 2
        %v1451 = vsel %vm438, %v1450, %v1449
        %v1452 = vrot.slane %v1439, 1
        %v1453 = vsel %vm441, %v1452, %v1451
        %v1454 = vpack.c.b16 %v1453, %v1453
        %1456 = vmatpush.bf16.msra.mxu0 %v484
        %1457 = vmatpush.bf16.msra.mxu0 %v483
        %1458 = vmatpush.bf16.msra.mxu0 %v482
        %1459 = vmatpush.bf16.msra.mxu0 %v481
        %1460 = vmatpush.bf16.msra.mxu0 %v480
        %1461 = vmatpush.bf16.msra.mxu0 %v479
        %1462 = vmatpush.bf16.msra.mxu0 %v478
        %1463 = vmatpush.bf16.msra.mxu0 %v477
        %1464 = vmatmul.bf16.gmra.mxu0 %v1454
        %v1465 = vpop.f32.mrf.mxu0
        %v1466 = vadd.f32 %v404, %v1465
        %v1467 = vpop.f32.mrf.mxu0
        %1468 = vdwg.mxu0
        %vm1469 = vcmp.gt.f32.partialorder %v1466, 0.0
        %v1470 = vmul.f32 %v1466, 0.01
        %v1471 = vsel %vm1469, %v1466, %v1470
        %v1472 = vpack.c.bf16 %v1471, %v1471
        %1473 = vmatpush.bf16.msra.mxu0 %v552
        %1474 = vmatpush.bf16.msra.mxu0 %v551
        %1475 = vmatpush.bf16.msra.mxu0 %v550
        %1476 = vmatpush.bf16.msra.mxu0 %v549
        %1477 = vmatpush.bf16.msra.mxu0 %v548
        %1478 = vmatpush.bf16.msra.mxu0 %v547
        %1479 = vmatpush.bf16.msra.mxu0 %v546
        %1480 = vmatpush.bf16.msra.mxu0 %v545
        %1481 = vmatmul.bf16.gmra.mxu0 %v1472
        %v1482 = vpop.f32.mrf.mxu0
        %v1483 = vadd.f32 %v511, %v1482
        %v1484 = vpop.f32.mrf.mxu0
        %1485 = vdwg.mxu0
        %vm1486 = vcmp.gt.f32.partialorder %v1483, 0.0
        %v1487 = vmul.f32 %v1483, 0.01
        %v1488 = vsel %vm1486, %v1483, %v1487
        %v1489 = vpack.c.bf16 %v1488, %v1488
        %1490 = vmatpush.bf16.msra.mxu0 %v620
        %1491 = vmatpush.bf16.msra.mxu0 %v619
        %1492 = vmatpush.bf16.msra.mxu0 %v618
        %1493 = vmatpush.bf16.msra.mxu0 %v617
        %1494 = vmatpush.bf16.msra.mxu0 %v616
        %1495 = vmatpush.bf16.msra.mxu0 %v615
        %1496 = vmatpush.bf16.msra.mxu0 %v614
        %1497 = vmatpush.bf16.msra.mxu0 %v613
        %1498 = vmatmul.bf16.gmra.mxu0 %v1489
        %v1499 = vpop.f32.mrf.mxu0
        %v1500 = vadd.f32 %v579, %v1499
        %v1501 = vpop.f32.mrf.mxu0
        %1502 = vdwg.mxu0
        %vm1503 = vcmp.gt.f32.partialorder %v1500, 0.0
        %v1504 = vmul.f32 %v1500, 0.01
        %v1505 = vsel %vm1503, %v1500, %v1504
        %v1506 = vadd.f32 %v1407, %v1505
        %v1515 = vrot.slane %v1409, 7
        %v1516 = vsel %vm423, %v1515, %v1408
        %v1517 = vrot.slane %v1410, 6
        %v1518 = vsel %vm426, %v1517, %v1516
        %v1519 = vrot.slane %v1411, 5
        %v1520 = vsel %vm429, %v1519, %v1518
        %v1521 = vrot.slane %v1412, 4
        %v1522 = vsel %vm432, %v1521, %v1520
        %v1523 = vrot.slane %v1413, 3
        %v1524 = vsel %vm435, %v1523, %v1522
        %v1525 = vrot.slane %v1414, 2
        %v1526 = vsel %vm438, %v1525, %v1524
        %v1527 = vrot.slane %v1415, 1
        %v1528 = vsel %vm441, %v1527, %v1526
        %v1530 = vadd.f32 %v1506, %v1528
        %v1531 = vld [vmem:[%s334 + $0x8] sm:$0x1]
        %v1532 = vld [vmem:[%s334 + $0x18] sm:$0x1]
        %v1533 = vld [vmem:[%s334 + $0x28] sm:$0x1]
        %v1534 = vld [vmem:[%s334 + $0x38] sm:$0x1]
        %v1535 = vld [vmem:[%s334 + $0x48] sm:$0x1]
        %v1536 = vld [vmem:[%s334 + $0x58] sm:$0x1]
        %v1537 = vld [vmem:[%s334 + $0x68] sm:$0x1]
        %v1538 = vld [vmem:[%s334 + $0x78] sm:$0x1]
        %v1539 = vpack.c.bf16 %v1531, %v1531
        %v1540 = vpack.c.bf16 %v1532, %v1532
        %v1541 = vpack.c.bf16 %v1533, %v1533
        %v1542 = vpack.c.bf16 %v1534, %v1534
        %v1543 = vpack.c.bf16 %v1535, %v1535
        %v1544 = vpack.c.bf16 %v1536, %v1536
        %v1545 = vpack.c.bf16 %v1537, %v1537
        %v1546 = vpack.c.bf16 %v1538, %v1538
        %v1555 = vunpack.c.l.b16 %v1539
        %v1556 = vunpack.c.l.b16 %v1540
        %v1557 = vunpack.c.l.b16 %v1541
        %v1558 = vunpack.c.l.b16 %v1542
        %v1559 = vunpack.c.l.b16 %v1543
        %v1560 = vunpack.c.l.b16 %v1544
        %v1561 = vunpack.c.l.b16 %v1545
        %v1562 = vunpack.c.l.b16 %v1546
        %v1563 = vrot.slane %v1556, 7
        %v1564 = vsel %vm423, %v1563, %v1555
        %v1565 = vrot.slane %v1557, 6
        %v1566 = vsel %vm426, %v1565, %v1564
        %v1567 = vrot.slane %v1558, 5
        %v1568 = vsel %vm429, %v1567, %v1566
        %v1569 = vrot.slane %v1559, 4
        %v1570 = vsel %vm432, %v1569, %v1568
        %v1571 = vrot.slane %v1560, 3
        %v1572 = vsel %vm435, %v1571, %v1570
        %v1573 = vrot.slane %v1561, 2
        %v1574 = vsel %vm438, %v1573, %v1572
        %v1575 = vrot.slane %v1562, 1
        %v1576 = vsel %vm441, %v1575, %v1574
        %v1577 = vpack.c.b16 %v1576, %v1576
        %1579 = vmatpush.bf16.msra.mxu0 %v484
        %1580 = vmatpush.bf16.msra.mxu0 %v483
        %1581 = vmatpush.bf16.msra.mxu0 %v482
        %1582 = vmatpush.bf16.msra.mxu0 %v481
        %1583 = vmatpush.bf16.msra.mxu0 %v480
        %1584 = vmatpush.bf16.msra.mxu0 %v479
        %1585 = vmatpush.bf16.msra.mxu0 %v478
        %1586 = vmatpush.bf16.msra.mxu0 %v477
        %1587 = vmatmul.bf16.gmra.mxu0 %v1577
        %v1588 = vpop.f32.mrf.mxu0
        %v1589 = vadd.f32 %v404, %v1588
        %v1590 = vpop.f32.mrf.mxu0
        %1591 = vdwg.mxu0
        %vm1592 = vcmp.gt.f32.partialorder %v1589, 0.0
        %v1593 = vmul.f32 %v1589, 0.01
        %v1594 = vsel %vm1592, %v1589, %v1593
        %v1595 = vpack.c.bf16 %v1594, %v1594
        %1596 = vmatpush.bf16.msra.mxu0 %v552
        %1597 = vmatpush.bf16.msra.mxu0 %v551
        %1598 = vmatpush.bf16.msra.mxu0 %v550
        %1599 = vmatpush.bf16.msra.mxu0 %v549
        %1600 = vmatpush.bf16.msra.mxu0 %v548
        %1601 = vmatpush.bf16.msra.mxu0 %v547
        %1602 = vmatpush.bf16.msra.mxu0 %v546
        %1603 = vmatpush.bf16.msra.mxu0 %v545
        %1604 = vmatmul.bf16.gmra.mxu0 %v1595
        %v1605 = vpop.f32.mrf.mxu0
        %v1606 = vadd.f32 %v511, %v1605
        %v1607 = vpop.f32.mrf.mxu0
        %1608 = vdwg.mxu0
        %vm1609 = vcmp.gt.f32.partialorder %v1606, 0.0
        %v1610 = vmul.f32 %v1606, 0.01
        %v1611 = vsel %vm1609, %v1606, %v1610
        %v1612 = vpack.c.bf16 %v1611, %v1611
        %1613 = vmatpush.bf16.msra.mxu0 %v620
        %1614 = vmatpush.bf16.msra.mxu0 %v619
        %1615 = vmatpush.bf16.msra.mxu0 %v618
        %1616 = vmatpush.bf16.msra.mxu0 %v617
        %1617 = vmatpush.bf16.msra.mxu0 %v616
        %1618 = vmatpush.bf16.msra.mxu0 %v615
        %1619 = vmatpush.bf16.msra.mxu0 %v614
        %1620 = vmatpush.bf16.msra.mxu0 %v613
        %1621 = vmatmul.bf16.gmra.mxu0 %v1612
        %v1622 = vpop.f32.mrf.mxu0
        %v1623 = vadd.f32 %v579, %v1622
        %v1624 = vpop.f32.mrf.mxu0
        %1625 = vdwg.mxu0
        %vm1626 = vcmp.gt.f32.partialorder %v1623, 0.0
        %v1627 = vmul.f32 %v1623, 0.01
        %v1628 = vsel %vm1626, %v1623, %v1627
        %v1629 = vadd.f32 %v1530, %v1628
        %v1638 = vrot.slane %v1532, 7
        %v1639 = vsel %vm423, %v1638, %v1531
        %v1640 = vrot.slane %v1533, 6
        %v1641 = vsel %vm426, %v1640, %v1639
        %v1642 = vrot.slane %v1534, 5
        %v1643 = vsel %vm429, %v1642, %v1641
        %v1644 = vrot.slane %v1535, 4
        %v1645 = vsel %vm432, %v1644, %v1643
        %v1646 = vrot.slane %v1536, 3
        %v1647 = vsel %vm435, %v1646, %v1645
        %v1648 = vrot.slane %v1537, 2
        %v1649 = vsel %vm438, %v1648, %v1647
        %v1650 = vrot.slane %v1538, 1
        %v1651 = vsel %vm441, %v1650, %v1649
        %v1653 = vadd.f32 %v1629, %v1651
        %v1654 = vld [vmem:[%s334 + $0x9] sm:$0x1]
        %v1655 = vld [vmem:[%s334 + $0x19] sm:$0x1]
        %v1656 = vld [vmem:[%s334 + $0x29] sm:$0x1]
        %v1657 = vld [vmem:[%s334 + $0x39] sm:$0x1]
        %v1658 = vld [vmem:[%s334 + $0x49] sm:$0x1]
        %v1659 = vld [vmem:[%s334 + $0x59] sm:$0x1]
        %v1660 = vld [vmem:[%s334 + $0x69] sm:$0x1]
        %v1661 = vld [vmem:[%s334 + $0x79] sm:$0x1]
        %v1662 = vpack.c.bf16 %v1654, %v1654
        %v1663 = vpack.c.bf16 %v1655, %v1655
        %v1664 = vpack.c.bf16 %v1656, %v1656
        %v1665 = vpack.c.bf16 %v1657, %v1657
        %v1666 = vpack.c.bf16 %v1658, %v1658
        %v1667 = vpack.c.bf16 %v1659, %v1659
        %v1668 = vpack.c.bf16 %v1660, %v1660
        %v1669 = vpack.c.bf16 %v1661, %v1661
        %v1678 = vunpack.c.l.b16 %v1662
        %v1679 = vunpack.c.l.b16 %v1663
        %v1680 = vunpack.c.l.b16 %v1664
        %v1681 = vunpack.c.l.b16 %v1665
        %v1682 = vunpack.c.l.b16 %v1666
        %v1683 = vunpack.c.l.b16 %v1667
        %v1684 = vunpack.c.l.b16 %v1668
        %v1685 = vunpack.c.l.b16 %v1669
        %v1686 = vrot.slane %v1679, 7
        %v1687 = vsel %vm423, %v1686, %v1678
        %v1688 = vrot.slane %v1680, 6
        %v1689 = vsel %vm426, %v1688, %v1687
        %v1690 = vrot.slane %v1681, 5
        %v1691 = vsel %vm429, %v1690, %v1689
        %v1692 = vrot.slane %v1682, 4
        %v1693 = vsel %vm432, %v1692, %v1691
        %v1694 = vrot.slane %v1683, 3
        %v1695 = vsel %vm435, %v1694, %v1693
        %v1696 = vrot.slane %v1684, 2
        %v1697 = vsel %vm438, %v1696, %v1695
        %v1698 = vrot.slane %v1685, 1
        %v1699 = vsel %vm441, %v1698, %v1697
        %v1700 = vpack.c.b16 %v1699, %v1699
        %1702 = vmatpush.bf16.msra.mxu0 %v484
        %1703 = vmatpush.bf16.msra.mxu0 %v483
        %1704 = vmatpush.bf16.msra.mxu0 %v482
        %1705 = vmatpush.bf16.msra.mxu0 %v481
        %1706 = vmatpush.bf16.msra.mxu0 %v480
        %1707 = vmatpush.bf16.msra.mxu0 %v479
        %1708 = vmatpush.bf16.msra.mxu0 %v478
        %1709 = vmatpush.bf16.msra.mxu0 %v477
        %1710 = vmatmul.bf16.gmra.mxu0 %v1700
        %v1711 = vpop.f32.mrf.mxu0
        %v1712 = vadd.f32 %v404, %v1711
        %v1713 = vpop.f32.mrf.mxu0
        %1714 = vdwg.mxu0
        %vm1715 = vcmp.gt.f32.partialorder %v1712, 0.0
        %v1716 = vmul.f32 %v1712, 0.01
        %v1717 = vsel %vm1715, %v1712, %v1716
        %v1718 = vpack.c.bf16 %v1717, %v1717
        %1719 = vmatpush.bf16.msra.mxu0 %v552
        %1720 = vmatpush.bf16.msra.mxu0 %v551
        %1721 = vmatpush.bf16.msra.mxu0 %v550
        %1722 = vmatpush.bf16.msra.mxu0 %v549
        %1723 = vmatpush.bf16.msra.mxu0 %v548
        %1724 = vmatpush.bf16.msra.mxu0 %v547
        %1725 = vmatpush.bf16.msra.mxu0 %v546
        %1726 = vmatpush.bf16.msra.mxu0 %v545
        %1727 = vmatmul.bf16.gmra.mxu0 %v1718
        %v1728 = vpop.f32.mrf.mxu0
        %v1729 = vadd.f32 %v511, %v1728
        %v1730 = vpop.f32.mrf.mxu0
        %1731 = vdwg.mxu0
        %vm1732 = vcmp.gt.f32.partialorder %v1729, 0.0
        %v1733 = vmul.f32 %v1729, 0.01
        %v1734 = vsel %vm1732, %v1729, %v1733
        %v1735 = vpack.c.bf16 %v1734, %v1734
        %1736 = vmatpush.bf16.msra.mxu0 %v620
        %1737 = vmatpush.bf16.msra.mxu0 %v619
        %1738 = vmatpush.bf16.msra.mxu0 %v618
        %1739 = vmatpush.bf16.msra.mxu0 %v617
        %1740 = vmatpush.bf16.msra.mxu0 %v616
        %1741 = vmatpush.bf16.msra.mxu0 %v615
        %1742 = vmatpush.bf16.msra.mxu0 %v614
        %1743 = vmatpush.bf16.msra.mxu0 %v613
        %1744 = vmatmul.bf16.gmra.mxu0 %v1735
        %v1745 = vpop.f32.mrf.mxu0
        %v1746 = vadd.f32 %v579, %v1745
        %v1747 = vpop.f32.mrf.mxu0
        %1748 = vdwg.mxu0
        %vm1749 = vcmp.gt.f32.partialorder %v1746, 0.0
        %v1750 = vmul.f32 %v1746, 0.01
        %v1751 = vsel %vm1749, %v1746, %v1750
        %v1752 = vadd.f32 %v1653, %v1751
        %v1761 = vrot.slane %v1655, 7
        %v1762 = vsel %vm423, %v1761, %v1654
        %v1763 = vrot.slane %v1656, 6
        %v1764 = vsel %vm426, %v1763, %v1762
        %v1765 = vrot.slane %v1657, 5
        %v1766 = vsel %vm429, %v1765, %v1764
        %v1767 = vrot.slane %v1658, 4
        %v1768 = vsel %vm432, %v1767, %v1766
        %v1769 = vrot.slane %v1659, 3
        %v1770 = vsel %vm435, %v1769, %v1768
        %v1771 = vrot.slane %v1660, 2
        %v1772 = vsel %vm438, %v1771, %v1770
        %v1773 = vrot.slane %v1661, 1
        %v1774 = vsel %vm441, %v1773, %v1772
        %v1776 = vadd.f32 %v1752, %v1774
        %v1777 = vmul.f32 %v1776, 0.1
        %v1778 = vpack.c.bf16 %v1777, %v1777
        %v1779 = vld [vmem:[%s7] sm:$0xf]
        %v1780 = vld [vmem:[%s7 + $0x4] sm:$0xf]
        %v1781 = vld [vmem:[%s7 + $0x8] sm:$0xf]
        %v1782 = vld [vmem:[%s7 + $0xc] sm:$0xf]
        %v1783 = vld [vmem:[%s7 + $0x10] sm:$0xf]
        %v1784 = vld [vmem:[%s7 + $0x14] sm:$0xf]
        %v1785 = vld [vmem:[%s7 + $0x18] sm:$0xf]
        %v1786 = vld [vmem:[%s7 + $0x1c] sm:$0xf]
        %v1787 = vld [vmem:[%s7 + $0x20] sm:$0xf]
        %v1788 = vld [vmem:[%s7 + $0x24] sm:$0xf]
        %v1789 = vld [vmem:[%s7 + $0x28] sm:$0xf]
        %v1790 = vld [vmem:[%s7 + $0x2c] sm:$0xf]
        %v1791 = vld [vmem:[%s7 + $0x30] sm:$0xf]
        %v1792 = vld [vmem:[%s7 + $0x34] sm:$0xf]
        %v1793 = vld [vmem:[%s7 + $0x38] sm:$0xf]
        %v1794 = vld [vmem:[%s7 + $0x3c] sm:$0xf]
        %v1795 = vld [vmem:[%s8] sm:$0x1]
        %v1797 = vperm.slane %v1795, 0
        %v1815 = vunpack.c.l.b16 %v1779
        %v1816 = vunpack.c.l.b16 %v1780
        %v1817 = vunpack.c.l.b16 %v1781
        %v1818 = vunpack.c.l.b16 %v1782
        %v1819 = vunpack.c.l.b16 %v1783
        %v1820 = vunpack.c.l.b16 %v1784
        %v1821 = vunpack.c.l.b16 %v1785
        %v1822 = vunpack.c.l.b16 %v1786
        %v1823 = vunpack.c.l.b16 %v1787
        %v1824 = vunpack.c.l.b16 %v1788
        %v1825 = vunpack.c.l.b16 %v1789
        %v1826 = vunpack.c.l.b16 %v1790
        %v1827 = vunpack.c.l.b16 %v1791
        %v1828 = vunpack.c.l.b16 %v1792
        %v1829 = vunpack.c.l.b16 %v1793
        %v1830 = vunpack.c.l.b16 %v1794
        %v1831 = vpack.c.b16 %v1816, %v1815
        %v1832 = vpack.c.b16 %v1818, %v1817
        %v1833 = vpack.c.b16 %v1820, %v1819
        %v1834 = vpack.c.b16 %v1822, %v1821
        %v1835 = vpack.c.b16 %v1824, %v1823
        %v1836 = vpack.c.b16 %v1826, %v1825
        %v1837 = vpack.c.b16 %v1828, %v1827
        %v1838 = vpack.c.b16 %v1830, %v1829
        %1847 = vmatpush.bf16.msra.mxu0 %v1838
        %1848 = vmatpush.bf16.msra.mxu0 %v1837
        %1849 = vmatpush.bf16.msra.mxu0 %v1836
        %1850 = vmatpush.bf16.msra.mxu0 %v1835
        %1851 = vmatpush.bf16.msra.mxu0 %v1834
        %1852 = vmatpush.bf16.msra.mxu0 %v1833
        %1853 = vmatpush.bf16.msra.mxu0 %v1832
        %1854 = vmatpush.bf16.msra.mxu0 %v1831
        %1855 = vmatmul.bf16.gmra.mxu0 %v1778
        %v1856 = vpop.f32.mrf.mxu0
        %v1857 = vadd.f32 %v1797, %v1856
        %v1858 = vpop.f32.mrf.mxu0
        %1859 = vdwg.mxu0
        %v1860 = vsub.f32 0.0, %v1857
        %v1861 = vmul.f32 %v1860, 1.442695
        %v1862 = vpow.pop %v1861
        %v1863 = vadd.f32 %v1862, 1.0
        %v1864 = vrcp.pop %v1863
        %v1865 = vmul.f32 %v1863, %v1864
        %v1866 = vsub.f32 1.0, %v1865
        %v1867 = vmul.f32 %v1864, %v1866
        %v1868 = vadd.f32 %v1864, %v1867
        %vm1869 = vweird.f32 %v1863
        %vm1870 = vweird.f32 %v1864
        %vm1871 = vmor %vm1869, %vm1870
        %v1872 = vsel %vm1871, %v1864, %v1868
        %v1873 = vand.u32 2147483647, %v1863
        %vm1874 = vcmp.eq.f32.partialorder %v1873, 8.507059e+37
        %v1875 = vand.u32 %v1863, 2147483648
        %v1876 = vor.u32 1.1754944e-38, %v1875
        %v1877 = vsel %vm1874, %v1876, %v1872
        %v1878 = vmul.f32 1.0, %v1877
        %1879 = vst [vmem:[%s328] sm:$0xff] %v1878
        %s1880 = sand.u32 %s225, 1
        %s1881 = scalar_lea.sflag [#allocation3], %s1880
        %s1882 = sand.u32 %s225, 1
        %s1883 = smul.addr %s1882, 8
        %s1884 = scalar_lea.vmem [#allocation2], %s1883
        // Predicated region
        $region57: #{tpu_custom_call.1} parent=55 // pred_check
          %p1885 = pneg %p235
        $region58: #{tpu_custom_call.1} parent=55 // pred_check_branch
          %1887 = sbr.rel (%p1885) target = $region60
        $region59: #{tpu_custom_call.1} parent=55 // pred_region
          %1889 = vsyncadd %s1881, 0
          %s1890 = smul.addr %s23, 8
          %s1891 = scalar_lea.hbm %s9, %s1890
          %s1893 = sshll.u32 %s1884, 4
          %s1894 = int_to_ptr.vmem [resolvable:$true] %s1893
          %s1895 = sshll.u32 %s1891, 4
          %s1896 = int_to_ptr.hbm [resolvable:$true] %s1895
          %1898 = dma.vmem_to_hbm [thread:$0]  %s1894, 128, %s1896, %s1881
        $region60: #{tpu_custom_call.1} parent=55 // pred_fallthru
          _
      $region56: #{tpu_custom_call.1} parent=5 // pred_fallthru
        _
      %p1899 = scmp.le.s32.totalorder 2, %s18
      // Predicated region
      $region61: #{tpu_custom_call.1} parent=5 // pred_check
        %p1900 = pneg %p1899
      $region62: #{tpu_custom_call.1} parent=5 // pred_check_branch
        %1902 = sbr.rel (%p1900) target = $region64
      $region63: #{tpu_custom_call.1} parent=5 // pred_region
        %s1903 = ssub.s32 %s18, 2
        // Predicated region
        $region65: #{tpu_custom_call.1} parent=63 // pred_check
          %p1904 = pneg %p241
        $region66: #{tpu_custom_call.1} parent=63 // pred_check_branch
          %1906 = sbr.rel (%p1904) target = $region68
        $region67: #{tpu_custom_call.1} parent=63 // pred_region
          %s1907 = sand.u32 %s226, 1
          %s1908 = scalar_lea.sflag [#allocation3], %s1907
          %s1909 = sand.u32 %s226, 1
          %s1910 = smul.addr %s1909, 8
          %s1911 = scalar_lea.vmem [#allocation2], %s1910
          %1913 = dma.done %s1908, 128
        $region68: #{tpu_custom_call.1} parent=63 // pred_fallthru
          _
      $region64: #{tpu_custom_call.1} parent=5 // pred_fallthru
        _
    $region6: #{tpu_custom_call.1} parent=1 // loop_footer
      %s22 = sadd.s32 1, %s18
    $region7: #{tpu_custom_call.1} parent=1 // loop_footer_branch
      %17 = sbr.rel target = $region3
    $region8: #{tpu_custom_call.1} parent=1 // loop_exit
      _
    %1914 = vsyncpa [#allocation3], 1
    %s1915 = scalar_lea.sflag [#allocation3], 1
    %1916 = vsyncpa %s1915, 1

</llo_original>
